<compile_context>
chip_gen: v7x
topology: tpu7x:2x2x1
jax: 0.10.0
libtpu: 0.0.40
codegen_flags: <defaults>
</compile_context>

<pallas_src>
import math
import functools

import jax
import jax.numpy as jnp
from jax.experimental import pallas as pl
from jax.experimental.pallas import tpu as pltpu


def _attn_kernel(slab_ref, o_ref, *, num_heads, seq, e_dim):
    H, L, S, E = num_heads, seq, seq, e_dim

    # Static sublane-slice views of the packed constant slab (free, no relayout).
    q_bd = slab_ref[0:H * L, :]              # (H*L, E) bf16: block-diag, scale pre-folded Q
    kt = slab_ref[H * L:H * L + E, :]        # (E, S)   bf16: K^T
    m_base = H * L + E                       # rows [m_base, m_base+H*S): stacked M_h

    # Stage 1: per-head scores for ALL heads in one lane-dense MXU matmul.
    # Row block h of `s` is scores_h = (Q_h K_h^T) / sqrt(head_dim).
    s = jnp.dot(q_bd, kt, preferred_element_type=jnp.float32)        # (H*L, S) f32

    # Stage 2: single fused softmax — plain minor-axis reduce over all heads at once.
    s = s - jnp.max(s, axis=-1, keepdims=True)
    p = jnp.exp(s)
    p = p / jnp.sum(p, axis=-1, keepdims=True)                        # exact reciprocal
    p = p.astype(jnp.bfloat16)                                        # (H*L, S)

    # Stage 3: fused (P @ V) @ Wo^T (+ out bias, pre-folded into M_h).
    # Per-head blocks are sublane slices; K=N=64 matmuls accumulated in f32.
    acc = jnp.dot(p[0:L, :], slab_ref[m_base:m_base + S, :],
                  preferred_element_type=jnp.float32)                 # (L, E) f32
    for h in range(1, H):
        acc = acc + jnp.dot(p[h * L:(h + 1) * L, :],
                            slab_ref[m_base + h * S:m_base + (h + 1) * S, :],
                            preferred_element_type=jnp.float32)

    # TODO(synk): output last dim is 64 (<128 lanes); a lane-dense (32,128) store +
    # wrapper reshape is possible but the required in-kernel relayout outweighs the
    # 8 masked vreg stores at this size.
    o_ref[...] = acc


@functools.partial(jax.jit, static_argnums=(1, 2, 3))
def mha_from_slab(slab, num_heads, seq, e_dim):
    kernel = functools.partial(_attn_kernel, num_heads=num_heads, seq=seq, e_dim=e_dim)
    vmem = pl.BlockSpec(memory_space=pltpu.MemorySpace.VMEM)
    return pl.pallas_call(
        kernel,
        out_shape=jax.ShapeDtypeStruct((seq, e_dim), jnp.float32),
        in_specs=[vmem],
        out_specs=vmem,
    )(slab)


class Model:
    def __init__(self, input_dim, value_dim, key_dim=None, num_heads=8,
                 dropout_p=0.2, key=None):
        key_dim = input_dim if key_dim is None else key_dim
        self.scale_factor = 1.0 / key_dim ** 0.5
        self.input_dim = input_dim
        self.num_heads = num_heads
        # TODO(synk): dropout_p is ignored — attention-weight dropout is random in
        # train mode; we implement the deterministic (eval-mode) attention.
        E = input_dim
        H = num_heads
        hd = E // H
        k1, k2 = jax.random.split(key, 2)
        # nn.MultiheadAttention parameters (deterministic synthetic init, zero biases).
        self.in_proj_weight = jax.random.normal(k1, (3 * E, E), jnp.float32) / math.sqrt(E)
        self.in_proj_bias = jnp.zeros((3 * E,), jnp.float32)
        self.out_proj_weight = jax.random.normal(k2, (E, E), jnp.float32) / math.sqrt(E)
        self.out_proj_bias = jnp.zeros((E,), jnp.float32)

        # ---- one-time constant folding: everything here depends only on parameters ----
        Wq, Wk, Wv = jnp.split(self.in_proj_weight, 3, axis=0)        # each (E, E)
        bq, bk, bv = jnp.split(self.in_proj_bias, 3, axis=0)          # each (E,)
        WoT = self.out_proj_weight.T                                  # (E, E)
        bo = self.out_proj_bias                                       # (E,)

        q_in = self.scale_factor * self.in_proj_weight[:E]            # (L=E, E), k_in == q_in
        # TODO(synk): original module passes v = in_proj_weight[E:] (2E rows), which trips
        # MultiheadAttention's key/value sequence-length assert; we use the value slice
        # in_proj_weight[E:2E] so k and v share the sequence length as attention requires.
        v_in = self.in_proj_weight[E:2 * E]                           # (S=E, E)

        # In-projections (f32), biases folded in.
        Q = q_in @ Wq.T + bq                                          # (L, E)
        K = q_in @ Wk.T + bk                                          # (S, E)
        V = v_in @ Wv.T + bv                                          # (S, E)

        L = S = E
        Qs = Q * (1.0 / math.sqrt(hd))                                # fold attention scale

        # Block-diagonal Q (heads stacked on rows): row block h keeps only head-h columns.
        Q_bd = jnp.zeros((H * L, E), jnp.float32)
        for h in range(H):
            Q_bd = Q_bd.at[h * L:(h + 1) * L, h * hd:(h + 1) * hd].set(
                Qs[:, h * hd:(h + 1) * hd])

        # M_h = V_h @ Wo_h^T + bo/H  (out-proj weight and bias folded; softmax rows sum
        # to 1, so the bo/H terms sum to exactly bo in the output).
        M_blocks = [V[:, h * hd:(h + 1) * hd] @ WoT[h * hd:(h + 1) * hd, :] + bo / H
                    for h in range(H)]
        M_stacked = jnp.concatenate(M_blocks, axis=0)                 # (H*S, E)

        # Single packed bf16 constant slab: [Q_bd (H*L) | K^T (E) | M_stacked (H*S)] rows.
        self._slab = jnp.concatenate([Q_bd, K.T, M_stacked], axis=0).astype(jnp.bfloat16)
        self._seq = L

    def __call__(self, x1, batch):
        # The PyTorch forward ignores x1/batch and attends over the projection weights.
        return mha_from_slab(self._slab, self.num_heads, self._seq, self.input_dim)


def _mha_ref(q, k, v, Wqkv, bqkv, Wo, bo, H):
    """Pure-JAX f32 reference (eval-mode MultiheadAttention) for sanity checking."""
    E = q.shape[1]
    hd = E // H
    Wq, Wk, Wv = jnp.split(Wqkv, 3, 0)
    bq, bk, bv = jnp.split(bqkv, 3, 0)
    Q = q @ Wq.T + bq
    K = k @ Wk.T + bk
    V = v @ Wv.T + bv
    Qh = Q.reshape(-1, H, hd).transpose(1, 0, 2)
    Kh = K.reshape(-1, H, hd).transpose(1, 0, 2)
    Vh = V.reshape(-1, H, hd).transpose(1, 0, 2)
    s = jnp.einsum('hld,hsd->hls', Qh, Kh) / math.sqrt(hd)
    p = jax.nn.softmax(s, axis=-1)
    o = jnp.einsum('hls,hsd->hld', p, Vh).transpose(1, 0, 2).reshape(-1, E)
    return o @ Wo.T + bo


if __name__ == "__main__":
    vocab_size = 64            # small input_dim, divisible by num_heads
    input_dim = vocab_size
    num_heads = 8
    dropout_p = 0.2
    value_dim = 64

    key = jax.random.PRNGKey(0)
    kx, kparams = jax.random.split(key)

    x1 = jax.random.normal(kx, (2, 16, input_dim), jnp.float32)
    batch = [x1.shape[0], x1.shape[1]]

    m = Model(input_dim, value_dim, num_heads=num_heads, dropout_p=dropout_p, key=kparams)
    x2 = m(x1, batch)
    x2 = jax.block_until_ready(x2)
    assert x2.shape == (input_dim, input_dim)

    # Sanity check against a pure-JAX f32 reference (kernel uses bf16 MXU operands).
    E = input_dim
    q = m.scale_factor * m.in_proj_weight[:E]
    v = m.in_proj_weight[E:2 * E]
    ref = _mha_ref(q, q, v, m.in_proj_weight, m.in_proj_bias,
                   m.out_proj_weight, m.out_proj_bias, num_heads)
    assert jnp.allclose(x2, ref, rtol=2e-2, atol=2e-2), float(jnp.max(jnp.abs(x2 - ref)))

    print("KERNEL_OK")
</pallas_src>

<mosaic_0001>
module attributes {stable_mosaic.version = 11 : i64} {
  func.func @_attn_kernel(%arg0: memref<1088x64xbf16, #tpu.memory_space<vmem>>, %arg1: memref<64x64xf32, #tpu.memory_space<vmem>>) attributes {dimension_semantics = [], scalar_prefetch = 0 : i64, scratch_operands = 0 : i64, tpu.core_type = #tpu.core_type<tc>} {
    %c0 = arith.constant 0 : index
    %c0_0 = arith.constant 0 : index
    %0 = vector.load %arg0[%c0, %c0_0] : memref<1088x64xbf16, #tpu.memory_space<vmem>>, vector<512x64xbf16>
    %c512 = arith.constant 512 : index
    %c0_1 = arith.constant 0 : index
    %1 = vector.load %arg0[%c512, %c0_1] : memref<1088x64xbf16, #tpu.memory_space<vmem>>, vector<64x64xbf16>
    %cst = arith.constant dense<0.000000e+00> : vector<512x64xf32>
    %2 = tpu.matmul %0, %1, %cst {dimension_numbers = #tpu.dot_dimension_numbers<[1], [0], [0], [1], [0, 0, 1, 1], [], []>} : vector<512x64xbf16>, vector<64x64xbf16>, vector<512x64xf32> -> vector<512x64xf32>
    %cst_2 = arith.constant dense<0xFF800000> : vector<512xf32>
    %3 = vector.multi_reduction <maximumf>, %2, %cst_2 [1] : vector<512x64xf32> to vector<512xf32>
    %4 = vector.shape_cast %3 : vector<512xf32> to vector<512x1xf32>
    %5 = vector.broadcast %4 : vector<512x1xf32> to vector<512x64xf32>
    %6 = arith.subf %2, %5 : vector<512x64xf32>
    %7 = math.exp %6 : vector<512x64xf32>
    %cst_3 = arith.constant dense<0.000000e+00> : vector<512xf32>
    %8 = vector.multi_reduction <add>, %7, %cst_3 [1] : vector<512x64xf32> to vector<512xf32>
    %9 = vector.shape_cast %8 : vector<512xf32> to vector<512x1xf32>
    %10 = vector.broadcast %9 : vector<512x1xf32> to vector<512x64xf32>
    %11 = arith.divf %7, %10 : vector<512x64xf32>
    %12 = arith.truncf %11 : vector<512x64xf32> to vector<512x64xbf16>
    %13 = vector.extract_strided_slice %12 {offsets = [0, 0], sizes = [64, 64], strides = [1, 1]} : vector<512x64xbf16> to vector<64x64xbf16>
    %c576 = arith.constant 576 : index
    %c0_4 = arith.constant 0 : index
    %14 = vector.load %arg0[%c576, %c0_4] : memref<1088x64xbf16, #tpu.memory_space<vmem>>, vector<64x64xbf16>
    %cst_5 = arith.constant dense<0.000000e+00> : vector<64x64xf32>
    %15 = tpu.matmul %13, %14, %cst_5 {dimension_numbers = #tpu.dot_dimension_numbers<[1], [0], [0], [1], [0, 0, 1, 1], [], []>} : vector<64x64xbf16>, vector<64x64xbf16>, vector<64x64xf32> -> vector<64x64xf32>
    %16 = vector.extract_strided_slice %12 {offsets = [64, 0], sizes = [64, 64], strides = [1, 1]} : vector<512x64xbf16> to vector<64x64xbf16>
    %c640 = arith.constant 640 : index
    %c0_6 = arith.constant 0 : index
    %17 = vector.load %arg0[%c640, %c0_6] : memref<1088x64xbf16, #tpu.memory_space<vmem>>, vector<64x64xbf16>
    %cst_7 = arith.constant dense<0.000000e+00> : vector<64x64xf32>
    %18 = tpu.matmul %16, %17, %cst_7 {dimension_numbers = #tpu.dot_dimension_numbers<[1], [0], [0], [1], [0, 0, 1, 1], [], []>} : vector<64x64xbf16>, vector<64x64xbf16>, vector<64x64xf32> -> vector<64x64xf32>
    %19 = arith.addf %15, %18 : vector<64x64xf32>
    %20 = vector.extract_strided_slice %12 {offsets = [128, 0], sizes = [64, 64], strides = [1, 1]} : vector<512x64xbf16> to vector<64x64xbf16>
    %c704 = arith.constant 704 : index
    %c0_8 = arith.constant 0 : index
    %21 = vector.load %arg0[%c704, %c0_8] : memref<1088x64xbf16, #tpu.memory_space<vmem>>, vector<64x64xbf16>
    %cst_9 = arith.constant dense<0.000000e+00> : vector<64x64xf32>
    %22 = tpu.matmul %20, %21, %cst_9 {dimension_numbers = #tpu.dot_dimension_numbers<[1], [0], [0], [1], [0, 0, 1, 1], [], []>} : vector<64x64xbf16>, vector<64x64xbf16>, vector<64x64xf32> -> vector<64x64xf32>
    %23 = arith.addf %19, %22 : vector<64x64xf32>
    %24 = vector.extract_strided_slice %12 {offsets = [192, 0], sizes = [64, 64], strides = [1, 1]} : vector<512x64xbf16> to vector<64x64xbf16>
    %c768 = arith.constant 768 : index
    %c0_10 = arith.constant 0 : index
    %25 = vector.load %arg0[%c768, %c0_10] : memref<1088x64xbf16, #tpu.memory_space<vmem>>, vector<64x64xbf16>
    %cst_11 = arith.constant dense<0.000000e+00> : vector<64x64xf32>
    %26 = tpu.matmul %24, %25, %cst_11 {dimension_numbers = #tpu.dot_dimension_numbers<[1], [0], [0], [1], [0, 0, 1, 1], [], []>} : vector<64x64xbf16>, vector<64x64xbf16>, vector<64x64xf32> -> vector<64x64xf32>
    %27 = arith.addf %23, %26 : vector<64x64xf32>
    %28 = vector.extract_strided_slice %12 {offsets = [256, 0], sizes = [64, 64], strides = [1, 1]} : vector<512x64xbf16> to vector<64x64xbf16>
    %c832 = arith.constant 832 : index
    %c0_12 = arith.constant 0 : index
    %29 = vector.load %arg0[%c832, %c0_12] : memref<1088x64xbf16, #tpu.memory_space<vmem>>, vector<64x64xbf16>
    %cst_13 = arith.constant dense<0.000000e+00> : vector<64x64xf32>
    %30 = tpu.matmul %28, %29, %cst_13 {dimension_numbers = #tpu.dot_dimension_numbers<[1], [0], [0], [1], [0, 0, 1, 1], [], []>} : vector<64x64xbf16>, vector<64x64xbf16>, vector<64x64xf32> -> vector<64x64xf32>
    %31 = arith.addf %27, %30 : vector<64x64xf32>
    %32 = vector.extract_strided_slice %12 {offsets = [320, 0], sizes = [64, 64], strides = [1, 1]} : vector<512x64xbf16> to vector<64x64xbf16>
    %c896 = arith.constant 896 : index
    %c0_14 = arith.constant 0 : index
    %33 = vector.load %arg0[%c896, %c0_14] : memref<1088x64xbf16, #tpu.memory_space<vmem>>, vector<64x64xbf16>
    %cst_15 = arith.constant dense<0.000000e+00> : vector<64x64xf32>
    %34 = tpu.matmul %32, %33, %cst_15 {dimension_numbers = #tpu.dot_dimension_numbers<[1], [0], [0], [1], [0, 0, 1, 1], [], []>} : vector<64x64xbf16>, vector<64x64xbf16>, vector<64x64xf32> -> vector<64x64xf32>
    %35 = arith.addf %31, %34 : vector<64x64xf32>
    %36 = vector.extract_strided_slice %12 {offsets = [384, 0], sizes = [64, 64], strides = [1, 1]} : vector<512x64xbf16> to vector<64x64xbf16>
    %c960 = arith.constant 960 : index
    %c0_16 = arith.constant 0 : index
    %37 = vector.load %arg0[%c960, %c0_16] : memref<1088x64xbf16, #tpu.memory_space<vmem>>, vector<64x64xbf16>
    %cst_17 = arith.constant dense<0.000000e+00> : vector<64x64xf32>
    %38 = tpu.matmul %36, %37, %cst_17 {dimension_numbers = #tpu.dot_dimension_numbers<[1], [0], [0], [1], [0, 0, 1, 1], [], []>} : vector<64x64xbf16>, vector<64x64xbf16>, vector<64x64xf32> -> vector<64x64xf32>
    %39 = arith.addf %35, %38 : vector<64x64xf32>
    %40 = vector.extract_strided_slice %12 {offsets = [448, 0], sizes = [64, 64], strides = [1, 1]} : vector<512x64xbf16> to vector<64x64xbf16>
    %c1024 = arith.constant 1024 : index
    %c0_18 = arith.constant 0 : index
    %41 = vector.load %arg0[%c1024, %c0_18] : memref<1088x64xbf16, #tpu.memory_space<vmem>>, vector<64x64xbf16>
    %cst_19 = arith.constant dense<0.000000e+00> : vector<64x64xf32>
    %42 = tpu.matmul %40, %41, %cst_19 {dimension_numbers = #tpu.dot_dimension_numbers<[1], [0], [0], [1], [0, 0, 1, 1], [], []>} : vector<64x64xbf16>, vector<64x64xbf16>, vector<64x64xf32> -> vector<64x64xf32>
    %43 = arith.addf %39, %42 : vector<64x64xf32>
    %c0_20 = arith.constant 0 : index
    %c0_21 = arith.constant 0 : index
    %44 = vector.load %arg1[%c0_20, %c0_21] : memref<64x64xf32, #tpu.memory_space<vmem>>, vector<64x64xf32>
    tpu.vector_store %arg1[%c0_20, %c0_21], %43 {strides = array<i32>} : memref<64x64xf32, #tpu.memory_space<vmem>>, vector<64x64xf32>,
    return
  }
}

</mosaic_0001>

<llo_original>
// kernel: mha_from_slab.1
$region0: #{mha_from_slab.1}
  #allocation0 [shape = 'u32[]', space=smem, size = 0x4, offset = 0x4, fixed_abs, tag = 'smem constant byte address 0x4 - core index']
  #allocation1 [shape = 'u32[144,128]{1,0:T(1,128)}', space=vmem, size = 0x12000, scoped, tag = 'internal scratch']
  %s0 = inlined_call_operand.vmem [shape: bf16[1088,64], index: 0, kind: input, shape index: {}]
  %s1 = inlined_call_operand.hbm [shape: f32[64,64], index: 1, kind: output, shape index: {}]
  %s2 = sld [smem:[#allocation0]]
  $region14: #{mha_from_slab.1} parent=0
    _
  %s4 = ssub.s32 1, %s2
  %s5 = scalar_select 0, %s4, %s2
  $region1: #{mha_from_slab.1} parent=0
    #allocation2 [shape = 'u8[32768]{0}', space=vmem, size = 0x8000, scoped, tag = 'output window, operand 0, single buffered']
    #allocation3 [shape = 's32[1]{0}', space=sflag, size = 0x4, scoped, tag = 'scoped memory for mha_from_slab.1']
    %6 = vsyncpa [#allocation3], 0
    // Predicated region
    $region2: #{mha_from_slab.1} parent=1 // pred_check
      _
    $region3: #{mha_from_slab.1} parent=1 // pred_check_branch
      %8 = sbr.rel (0) target = $region5
    $region4: #{mha_from_slab.1} parent=1 // pred_region
      _
    $region5: #{mha_from_slab.1} parent=1 // pred_fallthru
      _
    %v10 = vld [vmem:[%s0] sm:$0xf]
    %v11 = vld [vmem:[%s0 + $0x4] sm:$0xf]
    %v12 = vld [vmem:[%s0 + $0x8] sm:$0xf]
    %v13 = vld [vmem:[%s0 + $0xc] sm:$0xf]
    %v14 = vld [vmem:[%s0 + $0x10] sm:$0xf]
    %v15 = vld [vmem:[%s0 + $0x14] sm:$0xf]
    %v16 = vld [vmem:[%s0 + $0x18] sm:$0xf]
    %v17 = vld [vmem:[%s0 + $0x1c] sm:$0xf]
    %v18 = vld [vmem:[%s0 + $0x20] sm:$0xf]
    %v19 = vld [vmem:[%s0 + $0x24] sm:$0xf]
    %v20 = vld [vmem:[%s0 + $0x28] sm:$0xf]
    %v21 = vld [vmem:[%s0 + $0x2c] sm:$0xf]
    %v22 = vld [vmem:[%s0 + $0x30] sm:$0xf]
    %v23 = vld [vmem:[%s0 + $0x34] sm:$0xf]
    %v24 = vld [vmem:[%s0 + $0x38] sm:$0xf]
    %v25 = vld [vmem:[%s0 + $0x3c] sm:$0xf]
    %v26 = vld [vmem:[%s0 + $0x40] sm:$0xf]
    %v27 = vld [vmem:[%s0 + $0x44] sm:$0xf]
    %v28 = vld [vmem:[%s0 + $0x48] sm:$0xf]
    %v29 = vld [vmem:[%s0 + $0x4c] sm:$0xf]
    %v30 = vld [vmem:[%s0 + $0x50] sm:$0xf]
    %v31 = vld [vmem:[%s0 + $0x54] sm:$0xf]
    %v32 = vld [vmem:[%s0 + $0x58] sm:$0xf]
    %v33 = vld [vmem:[%s0 + $0x5c] sm:$0xf]
    %v34 = vld [vmem:[%s0 + $0x60] sm:$0xf]
    %v35 = vld [vmem:[%s0 + $0x64] sm:$0xf]
    %v36 = vld [vmem:[%s0 + $0x68] sm:$0xf]
    %v37 = vld [vmem:[%s0 + $0x6c] sm:$0xf]
    %v38 = vld [vmem:[%s0 + $0x70] sm:$0xf]
    %v39 = vld [vmem:[%s0 + $0x74] sm:$0xf]
    %v40 = vld [vmem:[%s0 + $0x78] sm:$0xf]
    %v41 = vld [vmem:[%s0 + $0x7c] sm:$0xf]
    %v42 = vld [vmem:[%s0 + $0x80] sm:$0xf]
    %v43 = vld [vmem:[%s0 + $0x84] sm:$0xf]
    %v44 = vld [vmem:[%s0 + $0x88] sm:$0xf]
    %v45 = vld [vmem:[%s0 + $0x8c] sm:$0xf]
    %v46 = vld [vmem:[%s0 + $0x90] sm:$0xf]
    %v47 = vld [vmem:[%s0 + $0x94] sm:$0xf]
    %v48 = vld [vmem:[%s0 + $0x98] sm:$0xf]
    %v49 = vld [vmem:[%s0 + $0x9c] sm:$0xf]
    %v50 = vld [vmem:[%s0 + $0xa0] sm:$0xf]
    %v51 = vld [vmem:[%s0 + $0xa4] sm:$0xf]
    %v52 = vld [vmem:[%s0 + $0xa8] sm:$0xf]
    %v53 = vld [vmem:[%s0 + $0xac] sm:$0xf]
    %v54 = vld [vmem:[%s0 + $0xb0] sm:$0xf]
    %v55 = vld [vmem:[%s0 + $0xb4] sm:$0xf]
    %v56 = vld [vmem:[%s0 + $0xb8] sm:$0xf]
    %v57 = vld [vmem:[%s0 + $0xbc] sm:$0xf]
    %v58 = vld [vmem:[%s0 + $0xc0] sm:$0xf]
    %v59 = vld [vmem:[%s0 + $0xc4] sm:$0xf]
    %v60 = vld [vmem:[%s0 + $0xc8] sm:$0xf]
    %v61 = vld [vmem:[%s0 + $0xcc] sm:$0xf]
    %v62 = vld [vmem:[%s0 + $0xd0] sm:$0xf]
    %v63 = vld [vmem:[%s0 + $0xd4] sm:$0xf]
    %v64 = vld [vmem:[%s0 + $0xd8] sm:$0xf]
    %v65 = vld [vmem:[%s0 + $0xdc] sm:$0xf]
    %v66 = vld [vmem:[%s0 + $0xe0] sm:$0xf]
    %v67 = vld [vmem:[%s0 + $0xe4] sm:$0xf]
    %v68 = vld [vmem:[%s0 + $0xe8] sm:$0xf]
    %v69 = vld [vmem:[%s0 + $0xec] sm:$0xf]
    %v70 = vld [vmem:[%s0 + $0xf0] sm:$0xf]
    %v71 = vld [vmem:[%s0 + $0xf4] sm:$0xf]
    %v72 = vld [vmem:[%s0 + $0xf8] sm:$0xf]
    %v73 = vld [vmem:[%s0 + $0xfc] sm:$0xf]
    %v74 = vld [vmem:[%s0 + $0x100] sm:$0xf]
    %v75 = vld [vmem:[%s0 + $0x104] sm:$0xf]
    %v76 = vld [vmem:[%s0 + $0x108] sm:$0xf]
    %v77 = vld [vmem:[%s0 + $0x10c] sm:$0xf]
    %v78 = vld [vmem:[%s0 + $0x110] sm:$0xf]
    %v79 = vld [vmem:[%s0 + $0x114] sm:$0xf]
    %v80 = vld [vmem:[%s0 + $0x118] sm:$0xf]
    %v81 = vld [vmem:[%s0 + $0x11c] sm:$0xf]
    %v146 = vunpack.c.l.b16 %v10
    %v147 = vunpack.c.l.b16 %v11
    %v148 = vunpack.c.l.b16 %v12
    %v149 = vunpack.c.l.b16 %v13
    %v150 = vunpack.c.l.b16 %v14
    %v151 = vunpack.c.l.b16 %v15
    %v152 = vunpack.c.l.b16 %v16
    %v153 = vunpack.c.l.b16 %v17
    %v154 = vunpack.c.l.b16 %v18
    %v155 = vunpack.c.l.b16 %v19
    %v156 = vunpack.c.l.b16 %v20
    %v157 = vunpack.c.l.b16 %v21
    %v158 = vunpack.c.l.b16 %v22
    %v159 = vunpack.c.l.b16 %v23
    %v160 = vunpack.c.l.b16 %v24
    %v161 = vunpack.c.l.b16 %v25
    %v162 = vunpack.c.l.b16 %v26
    %v163 = vunpack.c.l.b16 %v27
    %v164 = vunpack.c.l.b16 %v28
    %v165 = vunpack.c.l.b16 %v29
    %v166 = vunpack.c.l.b16 %v30
    %v167 = vunpack.c.l.b16 %v31
    %v168 = vunpack.c.l.b16 %v32
    %v169 = vunpack.c.l.b16 %v33
    %v170 = vunpack.c.l.b16 %v34
    %v171 = vunpack.c.l.b16 %v35
    %v172 = vunpack.c.l.b16 %v36
    %v173 = vunpack.c.l.b16 %v37
    %v174 = vunpack.c.l.b16 %v38
    %v175 = vunpack.c.l.b16 %v39
    %v176 = vunpack.c.l.b16 %v40
    %v177 = vunpack.c.l.b16 %v41
    %v178 = vunpack.c.l.b16 %v42
    %v179 = vunpack.c.l.b16 %v43
    %v180 = vunpack.c.l.b16 %v44
    %v181 = vunpack.c.l.b16 %v45
    %v182 = vunpack.c.l.b16 %v46
    %v183 = vunpack.c.l.b16 %v47
    %v184 = vunpack.c.l.b16 %v48
    %v185 = vunpack.c.l.b16 %v49
    %v186 = vunpack.c.l.b16 %v50
    %v187 = vunpack.c.l.b16 %v51
    %v188 = vunpack.c.l.b16 %v52
    %v189 = vunpack.c.l.b16 %v53
    %v190 = vunpack.c.l.b16 %v54
    %v191 = vunpack.c.l.b16 %v55
    %v192 = vunpack.c.l.b16 %v56
    %v193 = vunpack.c.l.b16 %v57
    %v194 = vunpack.c.l.b16 %v58
    %v195 = vunpack.c.l.b16 %v59
    %v196 = vunpack.c.l.b16 %v60
    %v197 = vunpack.c.l.b16 %v61
    %v198 = vunpack.c.l.b16 %v62
    %v199 = vunpack.c.l.b16 %v63
    %v200 = vunpack.c.l.b16 %v64
    %v201 = vunpack.c.l.b16 %v65
    %v202 = vunpack.c.l.b16 %v66
    %v203 = vunpack.c.l.b16 %v67
    %v204 = vunpack.c.l.b16 %v68
    %v205 = vunpack.c.l.b16 %v69
    %v206 = vunpack.c.l.b16 %v70
    %v207 = vunpack.c.l.b16 %v71
    %v208 = vunpack.c.l.b16 %v72
    %v209 = vunpack.c.l.b16 %v73
    %v210 = vpack.c.b16 %v147, %v146
    %v211 = vpack.c.b16 %v149, %v148
    %v212 = vpack.c.b16 %v151, %v150
    %v213 = vpack.c.b16 %v153, %v152
    %v214 = vpack.c.b16 %v155, %v154
    %v215 = vpack.c.b16 %v157, %v156
    %v216 = vpack.c.b16 %v159, %v158
    %v217 = vpack.c.b16 %v161, %v160
    %v218 = vpack.c.b16 %v163, %v162
    %v219 = vpack.c.b16 %v165, %v164
    %v220 = vpack.c.b16 %v167, %v166
    %v221 = vpack.c.b16 %v169, %v168
    %v222 = vpack.c.b16 %v171, %v170
    %v223 = vpack.c.b16 %v173, %v172
    %v224 = vpack.c.b16 %v175, %v174
    %v225 = vpack.c.b16 %v177, %v176
    %v226 = vpack.c.b16 %v179, %v178
    %v227 = vpack.c.b16 %v181, %v180
    %v228 = vpack.c.b16 %v183, %v182
    %v229 = vpack.c.b16 %v185, %v184
    %v230 = vpack.c.b16 %v187, %v186
    %v231 = vpack.c.b16 %v189, %v188
    %v232 = vpack.c.b16 %v191, %v190
    %v233 = vpack.c.b16 %v193, %v192
    %v234 = vpack.c.b16 %v195, %v194
    %v235 = vpack.c.b16 %v197, %v196
    %v236 = vpack.c.b16 %v199, %v198
    %v237 = vpack.c.b16 %v201, %v200
    %v238 = vpack.c.b16 %v203, %v202
    %v239 = vpack.c.b16 %v205, %v204
    %v240 = vpack.c.b16 %v207, %v206
    %v241 = vpack.c.b16 %v209, %v208
    %v250 = vunpack.c.l.b16 %v74
    %v251 = vunpack.c.l.b16 %v75
    %v252 = vunpack.c.l.b16 %v76
    %v253 = vunpack.c.l.b16 %v77
    %v254 = vunpack.c.l.b16 %v78
    %v255 = vunpack.c.l.b16 %v79
    %v256 = vunpack.c.l.b16 %v80
    %v257 = vunpack.c.l.b16 %v81
    %v258 = vpack.c.b16 %v251, %v250
    %v259 = vpack.c.b16 %v253, %v252
    %v260 = vpack.c.b16 %v255, %v254
    %v261 = vpack.c.b16 %v257, %v256
    %vm266 = vcmask 523264
    %v268 = vsel %vm266, %v210, 0
    %v271 = vsel %vm266, %v211, 0
    %v274 = vsel %vm266, %v212, 0
    %v277 = vsel %vm266, %v213, 0
    %v280 = vsel %vm266, %v214, 0
    %v283 = vsel %vm266, %v215, 0
    %v286 = vsel %vm266, %v216, 0
    %v289 = vsel %vm266, %v217, 0
    %v292 = vsel %vm266, %v218, 0
    %v295 = vsel %vm266, %v219, 0
    %v298 = vsel %vm266, %v220, 0
    %v301 = vsel %vm266, %v221, 0
    %v304 = vsel %vm266, %v222, 0
    %v307 = vsel %vm266, %v223, 0
    %v310 = vsel %vm266, %v224, 0
    %v313 = vsel %vm266, %v225, 0
    %v316 = vsel %vm266, %v226, 0
    %v319 = vsel %vm266, %v227, 0
    %v322 = vsel %vm266, %v228, 0
    %v325 = vsel %vm266, %v229, 0
    %v328 = vsel %vm266, %v230, 0
    %v331 = vsel %vm266, %v231, 0
    %v334 = vsel %vm266, %v232, 0
    %v337 = vsel %vm266, %v233, 0
    %v340 = vsel %vm266, %v234, 0
    %v343 = vsel %vm266, %v235, 0
    %v346 = vsel %vm266, %v236, 0
    %v349 = vsel %vm266, %v237, 0
    %v352 = vsel %vm266, %v238, 0
    %v355 = vsel %vm266, %v239, 0
    %v358 = vsel %vm266, %v240, 0
    %v361 = vsel %vm266, %v241, 0
    %363 = vmatprep.subr.bf16.mxu0 0
    %364 = vmatpush1.bf16.msra.mxu0 %v258
    %365 = vmatprep.subr.bf16.mxu0 0
    %366 = vmatpush1.bf16.msra.mxu0 %v259
    %367 = vmatprep.subr.bf16.mxu0 0
    %368 = vmatpush1.bf16.msra.mxu0 %v260
    %369 = vmatprep.subr.bf16.mxu0 0
    %370 = vmatpush1.bf16.msra.mxu0 %v261
    %371 = vmatprep.subr.bf16.mxu0 0
    %372 = vmatpush1.bf16.msra.mxu0 0
    %373 = vmatprep.subr.bf16.mxu0 0
    %374 = vmatpush1.bf16.msra.mxu0 0
    %375 = vmatprep.subr.bf16.mxu0 0
    %376 = vmatpush1.bf16.msra.mxu0 0
    %377 = vmatprep.subr.bf16.mxu0 0
    %378 = vmatpush1.bf16.msra.mxu0 0
    %379 = vmatprep.subr.bf16.mxu0 0
    %380 = vmatpush1.bf16.msra.mxu0 0
    %381 = vmatprep.subr.bf16.mxu0 0
    %382 = vmatpush1.bf16.msra.mxu0 0
    %383 = vmatprep.subr.bf16.mxu0 0
    %384 = vmatpush1.bf16.msra.mxu0 0
    %385 = vmatprep.subr.bf16.mxu0 0
    %386 = vmatpush1.bf16.msra.mxu0 0
    %387 = vmatprep.subr.bf16.mxu0 0
    %388 = vmatpush1.bf16.msra.mxu0 0
    %389 = vmatprep.subr.bf16.mxu0 0
    %390 = vmatpush1.bf16.msra.mxu0 0
    %391 = vmatprep.subr.bf16.mxu0 0
    %392 = vmatpush1.bf16.msra.mxu0 0
    %393 = vmatprep.subr.bf16.mxu0 0
    %394 = vmatpush1.bf16.msra.mxu0 0
    %395 = vmatprep.mubr.bf16.mxu0 0
    %396 = vmatmul.mubr.bf16.gmra.mrb[0].mxu0 %v268
    %v397 = vpop.f32.mrb[0].mxu0
    %v398 = vadd.f32 0.0, %v397
    %v399 = vpop.f32.mrb[0].mxu0
    %v400 = vpop.f32.mrb[0].mxu0
    %v401 = vadd.f32 0.0, %v400
    %v402 = vpop.f32.mrb[0].mxu0
    %403 = vmatprep.mubr.bf16.mxu0 0
    %404 = vmatmul.mubr.bf16.gmra.mrb[0].mxu0 %v271
    %v405 = vpop.f32.mrb[0].mxu0
    %v406 = vadd.f32 0.0, %v405
    %v407 = vpop.f32.mrb[0].mxu0
    %v408 = vpop.f32.mrb[0].mxu0
    %v409 = vadd.f32 0.0, %v408
    %v410 = vpop.f32.mrb[0].mxu0
    %411 = vmatprep.mubr.bf16.mxu0 0
    %412 = vmatmul.mubr.bf16.gmra.mrb[0].mxu0 %v274
    %v413 = vpop.f32.mrb[0].mxu0
    %v414 = vadd.f32 0.0, %v413
    %v415 = vpop.f32.mrb[0].mxu0
    %v416 = vpop.f32.mrb[0].mxu0
    %v417 = vadd.f32 0.0, %v416
    %v418 = vpop.f32.mrb[0].mxu0
    %419 = vmatprep.mubr.bf16.mxu0 0
    %420 = vmatmul.mubr.bf16.gmra.mrb[0].mxu0 %v277
    %v421 = vpop.f32.mrb[0].mxu0
    %v422 = vadd.f32 0.0, %v421
    %v423 = vpop.f32.mrb[0].mxu0
    %v424 = vpop.f32.mrb[0].mxu0
    %v425 = vadd.f32 0.0, %v424
    %v426 = vpop.f32.mrb[0].mxu0
    %427 = vmatprep.mubr.bf16.mxu0 0
    %428 = vmatmul.mubr.bf16.gmra.mrb[0].mxu0 %v280
    %v429 = vpop.f32.mrb[0].mxu0
    %v430 = vadd.f32 0.0, %v429
    %v431 = vpop.f32.mrb[0].mxu0
    %v432 = vpop.f32.mrb[0].mxu0
    %v433 = vadd.f32 0.0, %v432
    %v434 = vpop.f32.mrb[0].mxu0
    %435 = vmatprep.mubr.bf16.mxu0 0
    %436 = vmatmul.mubr.bf16.gmra.mrb[0].mxu0 %v283
    %v437 = vpop.f32.mrb[0].mxu0
    %v438 = vadd.f32 0.0, %v437
    %v439 = vpop.f32.mrb[0].mxu0
    %v440 = vpop.f32.mrb[0].mxu0
    %v441 = vadd.f32 0.0, %v440
    %v442 = vpop.f32.mrb[0].mxu0
    %443 = vmatprep.mubr.bf16.mxu0 0
    %444 = vmatmul.mubr.bf16.gmra.mrb[0].mxu0 %v286
    %v445 = vpop.f32.mrb[0].mxu0
    %v446 = vadd.f32 0.0, %v445
    %v447 = vpop.f32.mrb[0].mxu0
    %v448 = vpop.f32.mrb[0].mxu0
    %v449 = vadd.f32 0.0, %v448
    %v450 = vpop.f32.mrb[0].mxu0
    %451 = vmatprep.mubr.bf16.mxu0 0
    %452 = vmatmul.mubr.bf16.gmra.mrb[0].mxu0 %v289
    %v453 = vpop.f32.mrb[0].mxu0
    %v454 = vadd.f32 0.0, %v453
    %v455 = vpop.f32.mrb[0].mxu0
    %v456 = vpop.f32.mrb[0].mxu0
    %v457 = vadd.f32 0.0, %v456
    %v458 = vpop.f32.mrb[0].mxu0
    %459 = vmatprep.mubr.bf16.mxu0 0
    %460 = vmatmul.mubr.bf16.gmra.mrb[0].mxu0 %v292
    %v461 = vpop.f32.mrb[0].mxu0
    %v462 = vadd.f32 0.0, %v461
    %v463 = vpop.f32.mrb[0].mxu0
    %v464 = vpop.f32.mrb[0].mxu0
    %v465 = vadd.f32 0.0, %v464
    %v466 = vpop.f32.mrb[0].mxu0
    %467 = vmatprep.mubr.bf16.mxu0 0
    %468 = vmatmul.mubr.bf16.gmra.mrb[0].mxu0 %v295
    %v469 = vpop.f32.mrb[0].mxu0
    %v470 = vadd.f32 0.0, %v469
    %v471 = vpop.f32.mrb[0].mxu0
    %v472 = vpop.f32.mrb[0].mxu0
    %v473 = vadd.f32 0.0, %v472
    %v474 = vpop.f32.mrb[0].mxu0
    %475 = vmatprep.mubr.bf16.mxu0 0
    %476 = vmatmul.mubr.bf16.gmra.mrb[0].mxu0 %v298
    %v477 = vpop.f32.mrb[0].mxu0
    %v478 = vadd.f32 0.0, %v477
    %v479 = vpop.f32.mrb[0].mxu0
    %v480 = vpop.f32.mrb[0].mxu0
    %v481 = vadd.f32 0.0, %v480
    %v482 = vpop.f32.mrb[0].mxu0
    %483 = vmatprep.mubr.bf16.mxu0 0
    %484 = vmatmul.mubr.bf16.gmra.mrb[0].mxu0 %v301
    %v485 = vpop.f32.mrb[0].mxu0
    %v486 = vadd.f32 0.0, %v485
    %v487 = vpop.f32.mrb[0].mxu0
    %v488 = vpop.f32.mrb[0].mxu0
    %v489 = vadd.f32 0.0, %v488
    %v490 = vpop.f32.mrb[0].mxu0
    %491 = vmatprep.mubr.bf16.mxu0 0
    %492 = vmatmul.mubr.bf16.gmra.mrb[0].mxu0 %v304
    %v493 = vpop.f32.mrb[0].mxu0
    %v494 = vadd.f32 0.0, %v493
    %v495 = vpop.f32.mrb[0].mxu0
    %v496 = vpop.f32.mrb[0].mxu0
    %v497 = vadd.f32 0.0, %v496
    %v498 = vpop.f32.mrb[0].mxu0
    %499 = vmatprep.mubr.bf16.mxu0 0
    %500 = vmatmul.mubr.bf16.gmra.mrb[0].mxu0 %v307
    %v501 = vpop.f32.mrb[0].mxu0
    %v502 = vadd.f32 0.0, %v501
    %v503 = vpop.f32.mrb[0].mxu0
    %v504 = vpop.f32.mrb[0].mxu0
    %v505 = vadd.f32 0.0, %v504
    %v506 = vpop.f32.mrb[0].mxu0
    %507 = vmatprep.mubr.bf16.mxu0 0
    %508 = vmatmul.mubr.bf16.gmra.mrb[0].mxu0 %v310
    %v509 = vpop.f32.mrb[0].mxu0
    %v510 = vadd.f32 0.0, %v509
    %v511 = vpop.f32.mrb[0].mxu0
    %v512 = vpop.f32.mrb[0].mxu0
    %v513 = vadd.f32 0.0, %v512
    %v514 = vpop.f32.mrb[0].mxu0
    %515 = vmatprep.mubr.bf16.mxu0 0
    %516 = vmatmul.mubr.bf16.gmra.mrb[0].mxu0 %v313
    %v517 = vpop.f32.mrb[0].mxu0
    %v518 = vadd.f32 0.0, %v517
    %v519 = vpop.f32.mrb[0].mxu0
    %v520 = vpop.f32.mrb[0].mxu0
    %v521 = vadd.f32 0.0, %v520
    %v522 = vpop.f32.mrb[0].mxu0
    %523 = vmatprep.mubr.bf16.mxu0 0
    %524 = vmatmul.mubr.bf16.gmra.mrb[0].mxu0 %v316
    %v525 = vpop.f32.mrb[0].mxu0
    %v526 = vadd.f32 0.0, %v525
    %v527 = vpop.f32.mrb[0].mxu0
    %v528 = vpop.f32.mrb[0].mxu0
    %v529 = vadd.f32 0.0, %v528
    %v530 = vpop.f32.mrb[0].mxu0
    %531 = vmatprep.mubr.bf16.mxu0 0
    %532 = vmatmul.mubr.bf16.gmra.mrb[0].mxu0 %v319
    %v533 = vpop.f32.mrb[0].mxu0
    %v534 = vadd.f32 0.0, %v533
    %v535 = vpop.f32.mrb[0].mxu0
    %v536 = vpop.f32.mrb[0].mxu0
    %v537 = vadd.f32 0.0, %v536
    %v538 = vpop.f32.mrb[0].mxu0
    %539 = vmatprep.mubr.bf16.mxu0 0
    %540 = vmatmul.mubr.bf16.gmra.mrb[0].mxu0 %v322
    %v541 = vpop.f32.mrb[0].mxu0
    %v542 = vadd.f32 0.0, %v541
    %v543 = vpop.f32.mrb[0].mxu0
    %v544 = vpop.f32.mrb[0].mxu0
    %v545 = vadd.f32 0.0, %v544
    %v546 = vpop.f32.mrb[0].mxu0
    %547 = vmatprep.mubr.bf16.mxu0 0
    %548 = vmatmul.mubr.bf16.gmra.mrb[0].mxu0 %v325
    %v549 = vpop.f32.mrb[0].mxu0
    %v550 = vadd.f32 0.0, %v549
    %v551 = vpop.f32.mrb[0].mxu0
    %v552 = vpop.f32.mrb[0].mxu0
    %v553 = vadd.f32 0.0, %v552
    %v554 = vpop.f32.mrb[0].mxu0
    %555 = vmatprep.mubr.bf16.mxu0 0
    %556 = vmatmul.mubr.bf16.gmra.mrb[0].mxu0 %v328
    %v557 = vpop.f32.mrb[0].mxu0
    %v558 = vadd.f32 0.0, %v557
    %v559 = vpop.f32.mrb[0].mxu0
    %v560 = vpop.f32.mrb[0].mxu0
    %v561 = vadd.f32 0.0, %v560
    %v562 = vpop.f32.mrb[0].mxu0
    %563 = vmatprep.mubr.bf16.mxu0 0
    %564 = vmatmul.mubr.bf16.gmra.mrb[0].mxu0 %v331
    %v565 = vpop.f32.mrb[0].mxu0
    %v566 = vadd.f32 0.0, %v565
    %v567 = vpop.f32.mrb[0].mxu0
    %v568 = vpop.f32.mrb[0].mxu0
    %v569 = vadd.f32 0.0, %v568
    %v570 = vpop.f32.mrb[0].mxu0
    %571 = vmatprep.mubr.bf16.mxu0 0
    %572 = vmatmul.mubr.bf16.gmra.mrb[0].mxu0 %v334
    %v573 = vpop.f32.mrb[0].mxu0
    %v574 = vadd.f32 0.0, %v573
    %v575 = vpop.f32.mrb[0].mxu0
    %v576 = vpop.f32.mrb[0].mxu0
    %v577 = vadd.f32 0.0, %v576
    %v578 = vpop.f32.mrb[0].mxu0
    %579 = vmatprep.mubr.bf16.mxu0 0
    %580 = vmatmul.mubr.bf16.gmra.mrb[0].mxu0 %v337
    %v581 = vpop.f32.mrb[0].mxu0
    %v582 = vadd.f32 0.0, %v581
    %v583 = vpop.f32.mrb[0].mxu0
    %v584 = vpop.f32.mrb[0].mxu0
    %v585 = vadd.f32 0.0, %v584
    %v586 = vpop.f32.mrb[0].mxu0
    %587 = vmatprep.mubr.bf16.mxu0 0
    %588 = vmatmul.mubr.bf16.gmra.mrb[0].mxu0 %v340
    %v589 = vpop.f32.mrb[0].mxu0
    %v590 = vadd.f32 0.0, %v589
    %v591 = vpop.f32.mrb[0].mxu0
    %v592 = vpop.f32.mrb[0].mxu0
    %v593 = vadd.f32 0.0, %v592
    %v594 = vpop.f32.mrb[0].mxu0
    %595 = vmatprep.mubr.bf16.mxu0 0
    %596 = vmatmul.mubr.bf16.gmra.mrb[0].mxu0 %v343
    %v597 = vpop.f32.mrb[0].mxu0
    %v598 = vadd.f32 0.0, %v597
    %v599 = vpop.f32.mrb[0].mxu0
    %v600 = vpop.f32.mrb[0].mxu0
    %v601 = vadd.f32 0.0, %v600
    %v602 = vpop.f32.mrb[0].mxu0
    %603 = vmatprep.mubr.bf16.mxu0 0
    %604 = vmatmul.mubr.bf16.gmra.mrb[0].mxu0 %v346
    %v605 = vpop.f32.mrb[0].mxu0
    %v606 = vadd.f32 0.0, %v605
    %v607 = vpop.f32.mrb[0].mxu0
    %v608 = vpop.f32.mrb[0].mxu0
    %v609 = vadd.f32 0.0, %v608
    %v610 = vpop.f32.mrb[0].mxu0
    %611 = vmatprep.mubr.bf16.mxu0 0
    %612 = vmatmul.mubr.bf16.gmra.mrb[0].mxu0 %v349
    %v613 = vpop.f32.mrb[0].mxu0
    %v614 = vadd.f32 0.0, %v613
    %v615 = vpop.f32.mrb[0].mxu0
    %v616 = vpop.f32.mrb[0].mxu0
    %v617 = vadd.f32 0.0, %v616
    %v618 = vpop.f32.mrb[0].mxu0
    %619 = vmatprep.mubr.bf16.mxu0 0
    %620 = vmatmul.mubr.bf16.gmra.mrb[0].mxu0 %v352
    %v621 = vpop.f32.mrb[0].mxu0
    %v622 = vadd.f32 0.0, %v621
    %v623 = vpop.f32.mrb[0].mxu0
    %v624 = vpop.f32.mrb[0].mxu0
    %v625 = vadd.f32 0.0, %v624
    %v626 = vpop.f32.mrb[0].mxu0
    %627 = vmatprep.mubr.bf16.mxu0 0
    %628 = vmatmul.mubr.bf16.gmra.mrb[0].mxu0 %v355
    %v629 = vpop.f32.mrb[0].mxu0
    %v630 = vadd.f32 0.0, %v629
    %v631 = vpop.f32.mrb[0].mxu0
    %v632 = vpop.f32.mrb[0].mxu0
    %v633 = vadd.f32 0.0, %v632
    %v634 = vpop.f32.mrb[0].mxu0
    %635 = vmatprep.mubr.bf16.mxu0 0
    %636 = vmatmul.mubr.bf16.gmra.mrb[0].mxu0 %v358
    %v637 = vpop.f32.mrb[0].mxu0
    %v638 = vadd.f32 0.0, %v637
    %v639 = vpop.f32.mrb[0].mxu0
    %v640 = vpop.f32.mrb[0].mxu0
    %v641 = vadd.f32 0.0, %v640
    %v642 = vpop.f32.mrb[0].mxu0
    %643 = vmatprep.mubr.bf16.mxu0 0
    %644 = vmatmul.mubr.bf16.gmra.mrb[0].mxu0 %v361
    %v645 = vpop.f32.mrb[0].mxu0
    %v646 = vadd.f32 0.0, %v645
    %v647 = vpop.f32.mrb[0].mxu0
    %v648 = vpop.f32.mrb[0].mxu0
    %v649 = vadd.f32 0.0, %v648
    %v650 = vpop.f32.mrb[0].mxu0
    %651 = vdwg.mxu0
    %v652 = vsel %vm266, %v398, -inf
    %653 = vmax.xlane.f32.xlu0 %v652
    %v654 = vpop.xlane.xlu0 %653
    %v655 = vsel %vm266, %v401, -inf
    %656 = vmax.xlane.f32.xlu0 %v655
    %v657 = vpop.xlane.xlu0 %656
    %v658 = vsel %vm266, %v406, -inf
    %659 = vmax.xlane.f32.xlu0 %v658
    %v660 = vpop.xlane.xlu0 %659
    %v661 = vsel %vm266, %v409, -inf
    %662 = vmax.xlane.f32.xlu0 %v661
    %v663 = vpop.xlane.xlu0 %662
    %v664 = vsel %vm266, %v414, -inf
    %665 = vmax.xlane.f32.xlu0 %v664
    %v666 = vpop.xlane.xlu0 %665
    %v667 = vsel %vm266, %v417, -inf
    %668 = vmax.xlane.f32.xlu0 %v667
    %v669 = vpop.xlane.xlu0 %668
    %v670 = vsel %vm266, %v422, -inf
    %671 = vmax.xlane.f32.xlu0 %v670
    %v672 = vpop.xlane.xlu0 %671
    %v673 = vsel %vm266, %v425, -inf
    %674 = vmax.xlane.f32.xlu0 %v673
    %v675 = vpop.xlane.xlu0 %674
    %v676 = vsel %vm266, %v430, -inf
    %677 = vmax.xlane.f32.xlu0 %v676
    %v678 = vpop.xlane.xlu0 %677
    %v679 = vsel %vm266, %v433, -inf
    %680 = vmax.xlane.f32.xlu0 %v679
    %v681 = vpop.xlane.xlu0 %680
    %v682 = vsel %vm266, %v438, -inf
    %683 = vmax.xlane.f32.xlu0 %v682
    %v684 = vpop.xlane.xlu0 %683
    %v685 = vsel %vm266, %v441, -inf
    %686 = vmax.xlane.f32.xlu0 %v685
    %v687 = vpop.xlane.xlu0 %686
    %v688 = vsel %vm266, %v446, -inf
    %689 = vmax.xlane.f32.xlu0 %v688
    %v690 = vpop.xlane.xlu0 %689
    %v691 = vsel %vm266, %v449, -inf
    %692 = vmax.xlane.f32.xlu0 %v691
    %v693 = vpop.xlane.xlu0 %692
    %v694 = vsel %vm266, %v454, -inf
    %695 = vmax.xlane.f32.xlu0 %v694
    %v696 = vpop.xlane.xlu0 %695
    %v697 = vsel %vm266, %v457, -inf
    %698 = vmax.xlane.f32.xlu0 %v697
    %v699 = vpop.xlane.xlu0 %698
    %v700 = vsel %vm266, %v462, -inf
    %701 = vmax.xlane.f32.xlu0 %v700
    %v702 = vpop.xlane.xlu0 %701
    %v703 = vsel %vm266, %v465, -inf
    %704 = vmax.xlane.f32.xlu0 %v703
    %v705 = vpop.xlane.xlu0 %704
    %v706 = vsel %vm266, %v470, -inf
    %707 = vmax.xlane.f32.xlu0 %v706
    %v708 = vpop.xlane.xlu0 %707
    %v709 = vsel %vm266, %v473, -inf
    %710 = vmax.xlane.f32.xlu0 %v709
    %v711 = vpop.xlane.xlu0 %710
    %v712 = vsel %vm266, %v478, -inf
    %713 = vmax.xlane.f32.xlu0 %v712
    %v714 = vpop.xlane.xlu0 %713
    %v715 = vsel %vm266, %v481, -inf
    %716 = vmax.xlane.f32.xlu0 %v715
    %v717 = vpop.xlane.xlu0 %716
    %v718 = vsel %vm266, %v486, -inf
    %719 = vmax.xlane.f32.xlu0 %v718
    %v720 = vpop.xlane.xlu0 %719
    %v721 = vsel %vm266, %v489, -inf
    %722 = vmax.xlane.f32.xlu0 %v721
    %v723 = vpop.xlane.xlu0 %722
    %v724 = vsel %vm266, %v494, -inf
    %725 = vmax.xlane.f32.xlu0 %v724
    %v726 = vpop.xlane.xlu0 %725
    %v727 = vsel %vm266, %v497, -inf
    %728 = vmax.xlane.f32.xlu0 %v727
    %v729 = vpop.xlane.xlu0 %728
    %v730 = vsel %vm266, %v502, -inf
    %731 = vmax.xlane.f32.xlu0 %v730
    %v732 = vpop.xlane.xlu0 %731
    %v733 = vsel %vm266, %v505, -inf
    %734 = vmax.xlane.f32.xlu0 %v733
    %v735 = vpop.xlane.xlu0 %734
    %v736 = vsel %vm266, %v510, -inf
    %737 = vmax.xlane.f32.xlu0 %v736
    %v738 = vpop.xlane.xlu0 %737
    %v739 = vsel %vm266, %v513, -inf
    %740 = vmax.xlane.f32.xlu0 %v739
    %v741 = vpop.xlane.xlu0 %740
    %v742 = vsel %vm266, %v518, -inf
    %743 = vmax.xlane.f32.xlu0 %v742
    %v744 = vpop.xlane.xlu0 %743
    %v745 = vsel %vm266, %v521, -inf
    %746 = vmax.xlane.f32.xlu0 %v745
    %v747 = vpop.xlane.xlu0 %746
    %v748 = vsel %vm266, %v526, -inf
    %749 = vmax.xlane.f32.xlu0 %v748
    %v750 = vpop.xlane.xlu0 %749
    %v751 = vsel %vm266, %v529, -inf
    %752 = vmax.xlane.f32.xlu0 %v751
    %v753 = vpop.xlane.xlu0 %752
    %v754 = vsel %vm266, %v534, -inf
    %755 = vmax.xlane.f32.xlu0 %v754
    %v756 = vpop.xlane.xlu0 %755
    %v757 = vsel %vm266, %v537, -inf
    %758 = vmax.xlane.f32.xlu0 %v757
    %v759 = vpop.xlane.xlu0 %758
    %v760 = vsel %vm266, %v542, -inf
    %761 = vmax.xlane.f32.xlu0 %v760
    %v762 = vpop.xlane.xlu0 %761
    %v763 = vsel %vm266, %v545, -inf
    %764 = vmax.xlane.f32.xlu0 %v763
    %v765 = vpop.xlane.xlu0 %764
    %v766 = vsel %vm266, %v550, -inf
    %767 = vmax.xlane.f32.xlu0 %v766
    %v768 = vpop.xlane.xlu0 %767
    %v769 = vsel %vm266, %v553, -inf
    %770 = vmax.xlane.f32.xlu0 %v769
    %v771 = vpop.xlane.xlu0 %770
    %v772 = vsel %vm266, %v558, -inf
    %773 = vmax.xlane.f32.xlu0 %v772
    %v774 = vpop.xlane.xlu0 %773
    %v775 = vsel %vm266, %v561, -inf
    %776 = vmax.xlane.f32.xlu0 %v775
    %v777 = vpop.xlane.xlu0 %776
    %v778 = vsel %vm266, %v566, -inf
    %779 = vmax.xlane.f32.xlu0 %v778
    %v780 = vpop.xlane.xlu0 %779
    %v781 = vsel %vm266, %v569, -inf
    %782 = vmax.xlane.f32.xlu0 %v781
    %v783 = vpop.xlane.xlu0 %782
    %v784 = vsel %vm266, %v574, -inf
    %785 = vmax.xlane.f32.xlu0 %v784
    %v786 = vpop.xlane.xlu0 %785
    %v787 = vsel %vm266, %v577, -inf
    %788 = vmax.xlane.f32.xlu0 %v787
    %v789 = vpop.xlane.xlu0 %788
    %v790 = vsel %vm266, %v582, -inf
    %791 = vmax.xlane.f32.xlu0 %v790
    %v792 = vpop.xlane.xlu0 %791
    %v793 = vsel %vm266, %v585, -inf
    %794 = vmax.xlane.f32.xlu0 %v793
    %v795 = vpop.xlane.xlu0 %794
    %v796 = vsel %vm266, %v590, -inf
    %797 = vmax.xlane.f32.xlu0 %v796
    %v798 = vpop.xlane.xlu0 %797
    %v799 = vsel %vm266, %v593, -inf
    %800 = vmax.xlane.f32.xlu0 %v799
    %v801 = vpop.xlane.xlu0 %800
    %v802 = vsel %vm266, %v598, -inf
    %803 = vmax.xlane.f32.xlu0 %v802
    %v804 = vpop.xlane.xlu0 %803
    %v805 = vsel %vm266, %v601, -inf
    %806 = vmax.xlane.f32.xlu0 %v805
    %v807 = vpop.xlane.xlu0 %806
    %v808 = vsel %vm266, %v606, -inf
    %809 = vmax.xlane.f32.xlu0 %v808
    %v810 = vpop.xlane.xlu0 %809
    %v811 = vsel %vm266, %v609, -inf
    %812 = vmax.xlane.f32.xlu0 %v811
    %v813 = vpop.xlane.xlu0 %812
    %v814 = vsel %vm266, %v614, -inf
    %815 = vmax.xlane.f32.xlu0 %v814
    %v816 = vpop.xlane.xlu0 %815
    %v817 = vsel %vm266, %v617, -inf
    %818 = vmax.xlane.f32.xlu0 %v817
    %v819 = vpop.xlane.xlu0 %818
    %v820 = vsel %vm266, %v622, -inf
    %821 = vmax.xlane.f32.xlu0 %v820
    %v822 = vpop.xlane.xlu0 %821
    %v823 = vsel %vm266, %v625, -inf
    %824 = vmax.xlane.f32.xlu0 %v823
    %v825 = vpop.xlane.xlu0 %824
    %v826 = vsel %vm266, %v630, -inf
    %827 = vmax.xlane.f32.xlu0 %v826
    %v828 = vpop.xlane.xlu0 %827
    %v829 = vsel %vm266, %v633, -inf
    %830 = vmax.xlane.f32.xlu0 %v829
    %v831 = vpop.xlane.xlu0 %830
    %v832 = vsel %vm266, %v638, -inf
    %833 = vmax.xlane.f32.xlu0 %v832
    %v834 = vpop.xlane.xlu0 %833
    %v835 = vsel %vm266, %v641, -inf
    %836 = vmax.xlane.f32.xlu0 %v835
    %v837 = vpop.xlane.xlu0 %836
    %v838 = vsel %vm266, %v646, -inf
    %839 = vmax.xlane.f32.xlu0 %v838
    %v840 = vpop.xlane.xlu0 %839
    %v841 = vsel %vm266, %v649, -inf
    %842 = vmax.xlane.f32.xlu0 %v841
    %v843 = vpop.xlane.xlu0 %842
    %v844 = vsub.f32 %v398, %v654
    %v845 = vsub.f32 %v401, %v657
    %v846 = vsub.f32 %v406, %v660
    %v847 = vsub.f32 %v409, %v663
    %v848 = vsub.f32 %v414, %v666
    %v849 = vsub.f32 %v417, %v669
    %v850 = vsub.f32 %v422, %v672
    %v851 = vsub.f32 %v425, %v675
    %v852 = vsub.f32 %v430, %v678
    %v853 = vsub.f32 %v433, %v681
    %v854 = vsub.f32 %v438, %v684
    %v855 = vsub.f32 %v441, %v687
    %v856 = vsub.f32 %v446, %v690
    %v857 = vsub.f32 %v449, %v693
    %v858 = vsub.f32 %v454, %v696
    %v859 = vsub.f32 %v457, %v699
    %v860 = vsub.f32 %v462, %v702
    %v861 = vsub.f32 %v465, %v705
    %v862 = vsub.f32 %v470, %v708
    %v863 = vsub.f32 %v473, %v711
    %v864 = vsub.f32 %v478, %v714
    %v865 = vsub.f32 %v481, %v717
    %v866 = vsub.f32 %v486, %v720
    %v867 = vsub.f32 %v489, %v723
    %v868 = vsub.f32 %v494, %v726
    %v869 = vsub.f32 %v497, %v729
    %v870 = vsub.f32 %v502, %v732
    %v871 = vsub.f32 %v505, %v735
    %v872 = vsub.f32 %v510, %v738
    %v873 = vsub.f32 %v513, %v741
    %v874 = vsub.f32 %v518, %v744
    %v875 = vsub.f32 %v521, %v747
    %v876 = vsub.f32 %v526, %v750
    %v877 = vsub.f32 %v529, %v753
    %v878 = vsub.f32 %v534, %v756
    %v879 = vsub.f32 %v537, %v759
    %v880 = vsub.f32 %v542, %v762
    %v881 = vsub.f32 %v545, %v765
    %v882 = vsub.f32 %v550, %v768
    %v883 = vsub.f32 %v553, %v771
    %v884 = vsub.f32 %v558, %v774
    %v885 = vsub.f32 %v561, %v777
    %v886 = vsub.f32 %v566, %v780
    %v887 = vsub.f32 %v569, %v783
    %v888 = vsub.f32 %v574, %v786
    %v889 = vsub.f32 %v577, %v789
    %v890 = vsub.f32 %v582, %v792
    %v891 = vsub.f32 %v585, %v795
    %v892 = vsub.f32 %v590, %v798
    %v893 = vsub.f32 %v593, %v801
    %v894 = vsub.f32 %v598, %v804
    %v895 = vsub.f32 %v601, %v807
    %v896 = vsub.f32 %v606, %v810
    %v897 = vsub.f32 %v609, %v813
    %v898 = vsub.f32 %v614, %v816
    %v899 = vsub.f32 %v617, %v819
    %v900 = vsub.f32 %v622, %v822
    %v901 = vsub.f32 %v625, %v825
    %v902 = vsub.f32 %v630, %v828
    %v903 = vsub.f32 %v633, %v831
    %v904 = vsub.f32 %v638, %v834
    %v905 = vsub.f32 %v641, %v837
    %v906 = vsub.f32 %v646, %v840
    %v907 = vsub.f32 %v649, %v843
    %v908 = vmul.f32 %v844, 1.442695
    %v909 = vpow.pop %v908
    %v910 = vmul.f32 %v845, 1.442695
    %v911 = vpow.pop %v910
    %v912 = vmul.f32 %v846, 1.442695
    %v913 = vpow.pop %v912
    %v914 = vmul.f32 %v847, 1.442695
    %v915 = vpow.pop %v914
    %v916 = vmul.f32 %v848, 1.442695
    %v917 = vpow.pop %v916
    %v918 = vmul.f32 %v849, 1.442695
    %v919 = vpow.pop %v918
    %v920 = vmul.f32 %v850, 1.442695
    %v921 = vpow.pop %v920
    %v922 = vmul.f32 %v851, 1.442695
    %v923 = vpow.pop %v922
    %v924 = vmul.f32 %v852, 1.442695
    %v925 = vpow.pop %v924
    %v926 = vmul.f32 %v853, 1.442695
    %v927 = vpow.pop %v926
    %v928 = vmul.f32 %v854, 1.442695
    %v929 = vpow.pop %v928
    %v930 = vmul.f32 %v855, 1.442695
    %v931 = vpow.pop %v930
    %v932 = vmul.f32 %v856, 1.442695
    %v933 = vpow.pop %v932
    %v934 = vmul.f32 %v857, 1.442695
    %v935 = vpow.pop %v934
    %v936 = vmul.f32 %v858, 1.442695
    %v937 = vpow.pop %v936
    %v938 = vmul.f32 %v859, 1.442695
    %v939 = vpow.pop %v938
    %v940 = vmul.f32 %v860, 1.442695
    %v941 = vpow.pop %v940
    %v942 = vmul.f32 %v861, 1.442695
    %v943 = vpow.pop %v942
    %v944 = vmul.f32 %v862, 1.442695
    %v945 = vpow.pop %v944
    %v946 = vmul.f32 %v863, 1.442695
    %v947 = vpow.pop %v946
    %v948 = vmul.f32 %v864, 1.442695
    %v949 = vpow.pop %v948
    %v950 = vmul.f32 %v865, 1.442695
    %v951 = vpow.pop %v950
    %v952 = vmul.f32 %v866, 1.442695
    %v953 = vpow.pop %v952
    %v954 = vmul.f32 %v867, 1.442695
    %v955 = vpow.pop %v954
    %v956 = vmul.f32 %v868, 1.442695
    %v957 = vpow.pop %v956
    %v958 = vmul.f32 %v869, 1.442695
    %v959 = vpow.pop %v958
    %v960 = vmul.f32 %v870, 1.442695
    %v961 = vpow.pop %v960
    %v962 = vmul.f32 %v871, 1.442695
    %v963 = vpow.pop %v962
    %v964 = vmul.f32 %v872, 1.442695
    %v965 = vpow.pop %v964
    %v966 = vmul.f32 %v873, 1.442695
    %v967 = vpow.pop %v966
    %v968 = vmul.f32 %v874, 1.442695
    %v969 = vpow.pop %v968
    %v970 = vmul.f32 %v875, 1.442695
    %v971 = vpow.pop %v970
    %v972 = vmul.f32 %v876, 1.442695
    %v973 = vpow.pop %v972
    %v974 = vmul.f32 %v877, 1.442695
    %v975 = vpow.pop %v974
    %v976 = vmul.f32 %v878, 1.442695
    %v977 = vpow.pop %v976
    %v978 = vmul.f32 %v879, 1.442695
    %v979 = vpow.pop %v978
    %v980 = vmul.f32 %v880, 1.442695
    %v981 = vpow.pop %v980
    %v982 = vmul.f32 %v881, 1.442695
    %v983 = vpow.pop %v982
    %v984 = vmul.f32 %v882, 1.442695
    %v985 = vpow.pop %v984
    %v986 = vmul.f32 %v883, 1.442695
    %v987 = vpow.pop %v986
    %v988 = vmul.f32 %v884, 1.442695
    %v989 = vpow.pop %v988
    %v990 = vmul.f32 %v885, 1.442695
    %v991 = vpow.pop %v990
    %v992 = vmul.f32 %v886, 1.442695
    %v993 = vpow.pop %v992
    %v994 = vmul.f32 %v887, 1.442695
    %v995 = vpow.pop %v994
    %v996 = vmul.f32 %v888, 1.442695
    %v997 = vpow.pop %v996
    %v998 = vmul.f32 %v889, 1.442695
    %v999 = vpow.pop %v998
    %v1000 = vmul.f32 %v890, 1.442695
    %v1001 = vpow.pop %v1000
    %v1002 = vmul.f32 %v891, 1.442695
    %v1003 = vpow.pop %v1002
    %v1004 = vmul.f32 %v892, 1.442695
    %v1005 = vpow.pop %v1004
    %v1006 = vmul.f32 %v893, 1.442695
    %v1007 = vpow.pop %v1006
    %v1008 = vmul.f32 %v894, 1.442695
    %v1009 = vpow.pop %v1008
    %v1010 = vmul.f32 %v895, 1.442695
    %v1011 = vpow.pop %v1010
    %v1012 = vmul.f32 %v896, 1.442695
    %v1013 = vpow.pop %v1012
    %v1014 = vmul.f32 %v897, 1.442695
    %v1015 = vpow.pop %v1014
    %v1016 = vmul.f32 %v898, 1.442695
    %v1017 = vpow.pop %v1016
    %v1018 = vmul.f32 %v899, 1.442695
    %v1019 = vpow.pop %v1018
    %v1020 = vmul.f32 %v900, 1.442695
    %v1021 = vpow.pop %v1020
    %v1022 = vmul.f32 %v901, 1.442695
    %v1023 = vpow.pop %v1022
    %v1024 = vmul.f32 %v902, 1.442695
    %v1025 = vpow.pop %v1024
    %v1026 = vmul.f32 %v903, 1.442695
    %v1027 = vpow.pop %v1026
    %v1028 = vmul.f32 %v904, 1.442695
    %v1029 = vpow.pop %v1028
    %v1030 = vmul.f32 %v905, 1.442695
    %v1031 = vpow.pop %v1030
    %v1032 = vmul.f32 %v906, 1.442695
    %v1033 = vpow.pop %v1032
    %v1034 = vmul.f32 %v907, 1.442695
    %v1035 = vpow.pop %v1034
    %v1036 = vsel %vm266, %v909, 0.0
    %1037 = vadd.xlane.f32.xlu0 %v1036
    %v1038 = vpop.xlane.xlu0 %1037
    %v1039 = vsel %vm266, %v911, 0.0
    %1040 = vadd.xlane.f32.xlu0 %v1039
    %v1041 = vpop.xlane.xlu0 %1040
    %v1042 = vsel %vm266, %v913, 0.0
    %1043 = vadd.xlane.f32.xlu0 %v1042
    %v1044 = vpop.xlane.xlu0 %1043
    %v1045 = vsel %vm266, %v915, 0.0
    %1046 = vadd.xlane.f32.xlu0 %v1045
    %v1047 = vpop.xlane.xlu0 %1046
    %v1048 = vsel %vm266, %v917, 0.0
    %1049 = vadd.xlane.f32.xlu0 %v1048
    %v1050 = vpop.xlane.xlu0 %1049
    %v1051 = vsel %vm266, %v919, 0.0
    %1052 = vadd.xlane.f32.xlu0 %v1051
    %v1053 = vpop.xlane.xlu0 %1052
    %v1054 = vsel %vm266, %v921, 0.0
    %1055 = vadd.xlane.f32.xlu0 %v1054
    %v1056 = vpop.xlane.xlu0 %1055
    %v1057 = vsel %vm266, %v923, 0.0
    %1058 = vadd.xlane.f32.xlu0 %v1057
    %v1059 = vpop.xlane.xlu0 %1058
    %v1060 = vsel %vm266, %v925, 0.0
    %1061 = vadd.xlane.f32.xlu0 %v1060
    %v1062 = vpop.xlane.xlu0 %1061
    %v1063 = vsel %vm266, %v927, 0.0
    %1064 = vadd.xlane.f32.xlu0 %v1063
    %v1065 = vpop.xlane.xlu0 %1064
    %v1066 = vsel %vm266, %v929, 0.0
    %1067 = vadd.xlane.f32.xlu0 %v1066
    %v1068 = vpop.xlane.xlu0 %1067
    %v1069 = vsel %vm266, %v931, 0.0
    %1070 = vadd.xlane.f32.xlu0 %v1069
    %v1071 = vpop.xlane.xlu0 %1070
    %v1072 = vsel %vm266, %v933, 0.0
    %1073 = vadd.xlane.f32.xlu0 %v1072
    %v1074 = vpop.xlane.xlu0 %1073
    %v1075 = vsel %vm266, %v935, 0.0
    %1076 = vadd.xlane.f32.xlu0 %v1075
    %v1077 = vpop.xlane.xlu0 %1076
    %v1078 = vsel %vm266, %v937, 0.0
    %1079 = vadd.xlane.f32.xlu0 %v1078
    %v1080 = vpop.xlane.xlu0 %1079
    %v1081 = vsel %vm266, %v939, 0.0
    %1082 = vadd.xlane.f32.xlu0 %v1081
    %v1083 = vpop.xlane.xlu0 %1082
    %v1084 = vsel %vm266, %v941, 0.0
    %1085 = vadd.xlane.f32.xlu0 %v1084
    %v1086 = vpop.xlane.xlu0 %1085
    %v1087 = vsel %vm266, %v943, 0.0
    %1088 = vadd.xlane.f32.xlu0 %v1087
    %v1089 = vpop.xlane.xlu0 %1088
    %v1090 = vsel %vm266, %v945, 0.0
    %1091 = vadd.xlane.f32.xlu0 %v1090
    %v1092 = vpop.xlane.xlu0 %1091
    %v1093 = vsel %vm266, %v947, 0.0
    %1094 = vadd.xlane.f32.xlu0 %v1093
    %v1095 = vpop.xlane.xlu0 %1094
    %v1096 = vsel %vm266, %v949, 0.0
    %1097 = vadd.xlane.f32.xlu0 %v1096
    %v1098 = vpop.xlane.xlu0 %1097
    %v1099 = vsel %vm266, %v951, 0.0
    %1100 = vadd.xlane.f32.xlu0 %v1099
    %v1101 = vpop.xlane.xlu0 %1100
    %v1102 = vsel %vm266, %v953, 0.0
    %1103 = vadd.xlane.f32.xlu0 %v1102
    %v1104 = vpop.xlane.xlu0 %1103
    %v1105 = vsel %vm266, %v955, 0.0
    %1106 = vadd.xlane.f32.xlu0 %v1105
    %v1107 = vpop.xlane.xlu0 %1106
    %v1108 = vsel %vm266, %v957, 0.0
    %1109 = vadd.xlane.f32.xlu0 %v1108
    %v1110 = vpop.xlane.xlu0 %1109
    %v1111 = vsel %vm266, %v959, 0.0
    %1112 = vadd.xlane.f32.xlu0 %v1111
    %v1113 = vpop.xlane.xlu0 %1112
    %v1114 = vsel %vm266, %v961, 0.0
    %1115 = vadd.xlane.f32.xlu0 %v1114
    %v1116 = vpop.xlane.xlu0 %1115
    %v1117 = vsel %vm266, %v963, 0.0
    %1118 = vadd.xlane.f32.xlu0 %v1117
    %v1119 = vpop.xlane.xlu0 %1118
    %v1120 = vsel %vm266, %v965, 0.0
    %1121 = vadd.xlane.f32.xlu0 %v1120
    %v1122 = vpop.xlane.xlu0 %1121
    %v1123 = vsel %vm266, %v967, 0.0
    %1124 = vadd.xlane.f32.xlu0 %v1123
    %v1125 = vpop.xlane.xlu0 %1124
    %v1126 = vsel %vm266, %v969, 0.0
    %1127 = vadd.xlane.f32.xlu0 %v1126
    %v1128 = vpop.xlane.xlu0 %1127
    %v1129 = vsel %vm266, %v971, 0.0
    %1130 = vadd.xlane.f32.xlu0 %v1129
    %v1131 = vpop.xlane.xlu0 %1130
    %v1132 = vsel %vm266, %v973, 0.0
    %1133 = vadd.xlane.f32.xlu0 %v1132
    %v1134 = vpop.xlane.xlu0 %1133
    %v1135 = vsel %vm266, %v975, 0.0
    %1136 = vadd.xlane.f32.xlu0 %v1135
    %v1137 = vpop.xlane.xlu0 %1136
    %v1138 = vsel %vm266, %v977, 0.0
    %1139 = vadd.xlane.f32.xlu0 %v1138
    %v1140 = vpop.xlane.xlu0 %1139
    %v1141 = vsel %vm266, %v979, 0.0
    %1142 = vadd.xlane.f32.xlu0 %v1141
    %v1143 = vpop.xlane.xlu0 %1142
    %v1144 = vsel %vm266, %v981, 0.0
    %1145 = vadd.xlane.f32.xlu0 %v1144
    %v1146 = vpop.xlane.xlu0 %1145
    %v1147 = vsel %vm266, %v983, 0.0
    %1148 = vadd.xlane.f32.xlu0 %v1147
    %v1149 = vpop.xlane.xlu0 %1148
    %v1150 = vsel %vm266, %v985, 0.0
    %1151 = vadd.xlane.f32.xlu0 %v1150
    %v1152 = vpop.xlane.xlu0 %1151
    %v1153 = vsel %vm266, %v987, 0.0
    %1154 = vadd.xlane.f32.xlu0 %v1153
    %v1155 = vpop.xlane.xlu0 %1154
    %v1156 = vsel %vm266, %v989, 0.0
    %1157 = vadd.xlane.f32.xlu0 %v1156
    %v1158 = vpop.xlane.xlu0 %1157
    %v1159 = vsel %vm266, %v991, 0.0
    %1160 = vadd.xlane.f32.xlu0 %v1159
    %v1161 = vpop.xlane.xlu0 %1160
    %v1162 = vsel %vm266, %v993, 0.0
    %1163 = vadd.xlane.f32.xlu0 %v1162
    %v1164 = vpop.xlane.xlu0 %1163
    %v1165 = vsel %vm266, %v995, 0.0
    %1166 = vadd.xlane.f32.xlu0 %v1165
    %v1167 = vpop.xlane.xlu0 %1166
    %v1168 = vsel %vm266, %v997, 0.0
    %1169 = vadd.xlane.f32.xlu0 %v1168
    %v1170 = vpop.xlane.xlu0 %1169
    %v1171 = vsel %vm266, %v999, 0.0
    %1172 = vadd.xlane.f32.xlu0 %v1171
    %v1173 = vpop.xlane.xlu0 %1172
    %v1174 = vsel %vm266, %v1001, 0.0
    %1175 = vadd.xlane.f32.xlu0 %v1174
    %v1176 = vpop.xlane.xlu0 %1175
    %v1177 = vsel %vm266, %v1003, 0.0
    %1178 = vadd.xlane.f32.xlu0 %v1177
    %v1179 = vpop.xlane.xlu0 %1178
    %v1180 = vsel %vm266, %v1005, 0.0
    %1181 = vadd.xlane.f32.xlu0 %v1180
    %v1182 = vpop.xlane.xlu0 %1181
    %v1183 = vsel %vm266, %v1007, 0.0
    %1184 = vadd.xlane.f32.xlu0 %v1183
    %v1185 = vpop.xlane.xlu0 %1184
    %v1186 = vsel %vm266, %v1009, 0.0
    %1187 = vadd.xlane.f32.xlu0 %v1186
    %v1188 = vpop.xlane.xlu0 %1187
    %v1189 = vsel %vm266, %v1011, 0.0
    %1190 = vadd.xlane.f32.xlu0 %v1189
    %v1191 = vpop.xlane.xlu0 %1190
    %v1192 = vsel %vm266, %v1013, 0.0
    %1193 = vadd.xlane.f32.xlu0 %v1192
    %v1194 = vpop.xlane.xlu0 %1193
    %v1195 = vsel %vm266, %v1015, 0.0
    %1196 = vadd.xlane.f32.xlu0 %v1195
    %v1197 = vpop.xlane.xlu0 %1196
    %v1198 = vsel %vm266, %v1017, 0.0
    %1199 = vadd.xlane.f32.xlu0 %v1198
    %v1200 = vpop.xlane.xlu0 %1199
    %v1201 = vsel %vm266, %v1019, 0.0
    %1202 = vadd.xlane.f32.xlu0 %v1201
    %v1203 = vpop.xlane.xlu0 %1202
    %v1204 = vsel %vm266, %v1021, 0.0
    %1205 = vadd.xlane.f32.xlu0 %v1204
    %v1206 = vpop.xlane.xlu0 %1205
    %v1207 = vsel %vm266, %v1023, 0.0
    %1208 = vadd.xlane.f32.xlu0 %v1207
    %v1209 = vpop.xlane.xlu0 %1208
    %v1210 = vsel %vm266, %v1025, 0.0
    %1211 = vadd.xlane.f32.xlu0 %v1210
    %v1212 = vpop.xlane.xlu0 %1211
    %v1213 = vsel %vm266, %v1027, 0.0
    %1214 = vadd.xlane.f32.xlu0 %v1213
    %v1215 = vpop.xlane.xlu0 %1214
    %v1216 = vsel %vm266, %v1029, 0.0
    %1217 = vadd.xlane.f32.xlu0 %v1216
    %v1218 = vpop.xlane.xlu0 %1217
    %v1219 = vsel %vm266, %v1031, 0.0
    %1220 = vadd.xlane.f32.xlu0 %v1219
    %v1221 = vpop.xlane.xlu0 %1220
    %v1222 = vsel %vm266, %v1033, 0.0
    %1223 = vadd.xlane.f32.xlu0 %v1222
    %v1224 = vpop.xlane.xlu0 %1223
    %v1225 = vsel %vm266, %v1035, 0.0
    %1226 = vadd.xlane.f32.xlu0 %v1225
    %v1227 = vpop.xlane.xlu0 %1226
    %v1228 = vrcp.pop %v1038
    %v1229 = vmul.f32 %v909, %v1228
    %v1230 = vrcp.pop %v1041
    %v1231 = vmul.f32 %v911, %v1230
    %v1232 = vrcp.pop %v1044
    %v1233 = vmul.f32 %v913, %v1232
    %v1234 = vrcp.pop %v1047
    %v1235 = vmul.f32 %v915, %v1234
    %v1236 = vrcp.pop %v1050
    %v1237 = vmul.f32 %v917, %v1236
    %v1238 = vrcp.pop %v1053
    %v1239 = vmul.f32 %v919, %v1238
    %v1240 = vrcp.pop %v1056
    %v1241 = vmul.f32 %v921, %v1240
    %v1242 = vrcp.pop %v1059
    %v1243 = vmul.f32 %v923, %v1242
    %v1244 = vrcp.pop %v1062
    %v1245 = vmul.f32 %v925, %v1244
    %v1246 = vrcp.pop %v1065
    %v1247 = vmul.f32 %v927, %v1246
    %v1248 = vrcp.pop %v1068
    %v1249 = vmul.f32 %v929, %v1248
    %v1250 = vrcp.pop %v1071
    %v1251 = vmul.f32 %v931, %v1250
    %v1252 = vrcp.pop %v1074
    %v1253 = vmul.f32 %v933, %v1252
    %v1254 = vrcp.pop %v1077
    %v1255 = vmul.f32 %v935, %v1254
    %v1256 = vrcp.pop %v1080
    %v1257 = vmul.f32 %v937, %v1256
    %v1258 = vrcp.pop %v1083
    %v1259 = vmul.f32 %v939, %v1258
    %v1260 = vrcp.pop %v1086
    %v1261 = vmul.f32 %v941, %v1260
    %v1262 = vrcp.pop %v1089
    %v1263 = vmul.f32 %v943, %v1262
    %v1264 = vrcp.pop %v1092
    %v1265 = vmul.f32 %v945, %v1264
    %v1266 = vrcp.pop %v1095
    %v1267 = vmul.f32 %v947, %v1266
    %v1268 = vrcp.pop %v1098
    %v1269 = vmul.f32 %v949, %v1268
    %v1270 = vrcp.pop %v1101
    %v1271 = vmul.f32 %v951, %v1270
    %v1272 = vrcp.pop %v1104
    %v1273 = vmul.f32 %v953, %v1272
    %v1274 = vrcp.pop %v1107
    %v1275 = vmul.f32 %v955, %v1274
    %v1276 = vrcp.pop %v1110
    %v1277 = vmul.f32 %v957, %v1276
    %v1278 = vrcp.pop %v1113
    %v1279 = vmul.f32 %v959, %v1278
    %v1280 = vrcp.pop %v1116
    %v1281 = vmul.f32 %v961, %v1280
    %v1282 = vrcp.pop %v1119
    %v1283 = vmul.f32 %v963, %v1282
    %v1284 = vrcp.pop %v1122
    %v1285 = vmul.f32 %v965, %v1284
    %v1286 = vrcp.pop %v1125
    %v1287 = vmul.f32 %v967, %v1286
    %v1288 = vrcp.pop %v1128
    %v1289 = vmul.f32 %v969, %v1288
    %v1290 = vrcp.pop %v1131
    %v1291 = vmul.f32 %v971, %v1290
    %v1292 = vrcp.pop %v1134
    %v1293 = vmul.f32 %v973, %v1292
    %v1294 = vrcp.pop %v1137
    %v1295 = vmul.f32 %v975, %v1294
    %v1296 = vrcp.pop %v1140
    %v1297 = vmul.f32 %v977, %v1296
    %v1298 = vrcp.pop %v1143
    %v1299 = vmul.f32 %v979, %v1298
    %v1300 = vrcp.pop %v1146
    %v1301 = vmul.f32 %v981, %v1300
    %v1302 = vrcp.pop %v1149
    %v1303 = vmul.f32 %v983, %v1302
    %v1304 = vrcp.pop %v1152
    %v1305 = vmul.f32 %v985, %v1304
    %v1306 = vrcp.pop %v1155
    %v1307 = vmul.f32 %v987, %v1306
    %v1308 = vrcp.pop %v1158
    %v1309 = vmul.f32 %v989, %v1308
    %v1310 = vrcp.pop %v1161
    %v1311 = vmul.f32 %v991, %v1310
    %v1312 = vrcp.pop %v1164
    %v1313 = vmul.f32 %v993, %v1312
    %v1314 = vrcp.pop %v1167
    %v1315 = vmul.f32 %v995, %v1314
    %v1316 = vrcp.pop %v1170
    %v1317 = vmul.f32 %v997, %v1316
    %v1318 = vrcp.pop %v1173
    %v1319 = vmul.f32 %v999, %v1318
    %v1320 = vrcp.pop %v1176
    %v1321 = vmul.f32 %v1001, %v1320
    %v1322 = vrcp.pop %v1179
    %v1323 = vmul.f32 %v1003, %v1322
    %v1324 = vrcp.pop %v1182
    %v1325 = vmul.f32 %v1005, %v1324
    %v1326 = vrcp.pop %v1185
    %v1327 = vmul.f32 %v1007, %v1326
    %v1328 = vrcp.pop %v1188
    %v1329 = vmul.f32 %v1009, %v1328
    %v1330 = vrcp.pop %v1191
    %v1331 = vmul.f32 %v1011, %v1330
    %v1332 = vrcp.pop %v1194
    %v1333 = vmul.f32 %v1013, %v1332
    %v1334 = vrcp.pop %v1197
    %v1335 = vmul.f32 %v1015, %v1334
    %v1336 = vrcp.pop %v1200
    %v1337 = vmul.f32 %v1017, %v1336
    %v1338 = vrcp.pop %v1203
    %v1339 = vmul.f32 %v1019, %v1338
    %v1340 = vrcp.pop %v1206
    %v1341 = vmul.f32 %v1021, %v1340
    %v1342 = vrcp.pop %v1209
    %v1343 = vmul.f32 %v1023, %v1342
    %v1344 = vrcp.pop %v1212
    %v1345 = vmul.f32 %v1025, %v1344
    %v1346 = vrcp.pop %v1215
    %v1347 = vmul.f32 %v1027, %v1346
    %v1348 = vrcp.pop %v1218
    %v1349 = vmul.f32 %v1029, %v1348
    %v1350 = vrcp.pop %v1221
    %v1351 = vmul.f32 %v1031, %v1350
    %v1352 = vrcp.pop %v1224
    %v1353 = vmul.f32 %v1033, %v1352
    %v1354 = vrcp.pop %v1227
    %v1355 = vmul.f32 %v1035, %v1354
    %v1356 = vpack.c.bf16 %v1231, %v1229
    %v1357 = vpack.c.bf16 %v1235, %v1233
    %v1358 = vpack.c.bf16 %v1239, %v1237
    %v1359 = vpack.c.bf16 %v1243, %v1241
    %v1360 = vpack.c.bf16 %v1247, %v1245
    %v1361 = vpack.c.bf16 %v1251, %v1249
    %v1362 = vpack.c.bf16 %v1255, %v1253
    %v1363 = vpack.c.bf16 %v1259, %v1257
    %v1364 = vpack.c.bf16 %v1263, %v1261
    %v1365 = vpack.c.bf16 %v1267, %v1265
    %v1366 = vpack.c.bf16 %v1271, %v1269
    %v1367 = vpack.c.bf16 %v1275, %v1273
    %v1368 = vpack.c.bf16 %v1279, %v1277
    %v1369 = vpack.c.bf16 %v1283, %v1281
    %v1370 = vpack.c.bf16 %v1287, %v1285
    %v1371 = vpack.c.bf16 %v1291, %v1289
    %v1372 = vpack.c.bf16 %v1295, %v1293
    %v1373 = vpack.c.bf16 %v1299, %v1297
    %v1374 = vpack.c.bf16 %v1303, %v1301
    %v1375 = vpack.c.bf16 %v1307, %v1305
    %v1376 = vpack.c.bf16 %v1311, %v1309
    %v1377 = vpack.c.bf16 %v1315, %v1313
    %v1378 = vpack.c.bf16 %v1319, %v1317
    %v1379 = vpack.c.bf16 %v1323, %v1321
    %v1380 = vpack.c.bf16 %v1327, %v1325
    %v1381 = vpack.c.bf16 %v1331, %v1329
    %v1382 = vpack.c.bf16 %v1335, %v1333
    %v1383 = vpack.c.bf16 %v1339, %v1337
    %v1384 = vpack.c.bf16 %v1343, %v1341
    %v1385 = vpack.c.bf16 %v1347, %v1345
    %v1386 = vpack.c.bf16 %v1351, %v1349
    %v1387 = vpack.c.bf16 %v1355, %v1353
    %v1388 = vld [vmem:[%s0 + $0x120] sm:$0xf]
    %v1389 = vld [vmem:[%s0 + $0x124] sm:$0xf]
    %v1390 = vld [vmem:[%s0 + $0x128] sm:$0xf]
    %v1391 = vld [vmem:[%s0 + $0x12c] sm:$0xf]
    %v1392 = vld [vmem:[%s0 + $0x130] sm:$0xf]
    %v1393 = vld [vmem:[%s0 + $0x134] sm:$0xf]
    %v1394 = vld [vmem:[%s0 + $0x138] sm:$0xf]
    %v1395 = vld [vmem:[%s0 + $0x13c] sm:$0xf]
    %v1396 = vld [vmem:[%s0 + $0x140] sm:$0xf]
    %v1397 = vld [vmem:[%s0 + $0x144] sm:$0xf]
    %v1398 = vld [vmem:[%s0 + $0x148] sm:$0xf]
    %v1399 = vld [vmem:[%s0 + $0x14c] sm:$0xf]
    %v1400 = vld [vmem:[%s0 + $0x150] sm:$0xf]
    %v1401 = vld [vmem:[%s0 + $0x154] sm:$0xf]
    %v1402 = vld [vmem:[%s0 + $0x158] sm:$0xf]
    %v1403 = vld [vmem:[%s0 + $0x15c] sm:$0xf]
    %v1412 = vunpack.c.l.b16 %v1396
    %v1413 = vunpack.c.l.b16 %v1397
    %v1414 = vunpack.c.l.b16 %v1398
    %v1415 = vunpack.c.l.b16 %v1399
    %v1416 = vunpack.c.l.b16 %v1400
    %v1417 = vunpack.c.l.b16 %v1401
    %v1418 = vunpack.c.l.b16 %v1402
    %v1419 = vunpack.c.l.b16 %v1403
    %v1420 = vpack.c.b16 %v1413, %v1412
    %v1421 = vpack.c.b16 %v1415, %v1414
    %v1422 = vpack.c.b16 %v1417, %v1416
    %v1423 = vpack.c.b16 %v1419, %v1418
    %v1429 = vsel %vm266, %v1360, 0
    %v1432 = vsel %vm266, %v1361, 0
    %v1435 = vsel %vm266, %v1362, 0
    %v1438 = vsel %vm266, %v1363, 0
    %1440 = vmatprep.subr.bf16.mxu0 0
    %1441 = vmatpush1.bf16.msra.mxu0 %v1420
    %1442 = vmatprep.subr.bf16.mxu0 0
    %1443 = vmatpush1.bf16.msra.mxu0 %v1421
    %1444 = vmatprep.subr.bf16.mxu0 0
    %1445 = vmatpush1.bf16.msra.mxu0 %v1422
    %1446 = vmatprep.subr.bf16.mxu0 0
    %1447 = vmatpush1.bf16.msra.mxu0 %v1423
    %1448 = vmatprep.subr.bf16.mxu0 0
    %1449 = vmatpush1.bf16.msra.mxu0 0
    %1450 = vmatprep.subr.bf16.mxu0 0
    %1451 = vmatpush1.bf16.msra.mxu0 0
    %1452 = vmatprep.subr.bf16.mxu0 0
    %1453 = vmatpush1.bf16.msra.mxu0 0
    %1454 = vmatprep.subr.bf16.mxu0 0
    %1455 = vmatpush1.bf16.msra.mxu0 0
    %1456 = vmatprep.subr.bf16.mxu0 0
    %1457 = vmatpush1.bf16.msra.mxu0 0
    %1458 = vmatprep.subr.bf16.mxu0 0
    %1459 = vmatpush1.bf16.msra.mxu0 0
    %1460 = vmatprep.subr.bf16.mxu0 0
    %1461 = vmatpush1.bf16.msra.mxu0 0
    %1462 = vmatprep.subr.bf16.mxu0 0
    %1463 = vmatpush1.bf16.msra.mxu0 0
    %1464 = vmatprep.subr.bf16.mxu0 0
    %1465 = vmatpush1.bf16.msra.mxu0 0
    %1466 = vmatprep.subr.bf16.mxu0 0
    %1467 = vmatpush1.bf16.msra.mxu0 0
    %1468 = vmatprep.subr.bf16.mxu0 0
    %1469 = vmatpush1.bf16.msra.mxu0 0
    %1470 = vmatprep.subr.bf16.mxu0 0
    %1471 = vmatpush1.bf16.msra.mxu0 0
    %1472 = vmatprep.mubr.bf16.mxu0 0
    %1473 = vmatmul.mubr.bf16.gmra.mrb[0].mxu0 %v1429
    %v1474 = vpop.f32.mrb[0].mxu0
    %v1475 = vadd.f32 0.0, %v1474
    %v1476 = vpop.f32.mrb[0].mxu0
    %v1477 = vpop.f32.mrb[0].mxu0
    %v1478 = vadd.f32 0.0, %v1477
    %v1479 = vpop.f32.mrb[0].mxu0
    %1480 = vmatprep.mubr.bf16.mxu0 0
    %1481 = vmatmul.mubr.bf16.gmra.mrb[0].mxu0 %v1432
    %v1482 = vpop.f32.mrb[0].mxu0
    %v1483 = vadd.f32 0.0, %v1482
    %v1484 = vpop.f32.mrb[0].mxu0
    %v1485 = vpop.f32.mrb[0].mxu0
    %v1486 = vadd.f32 0.0, %v1485
    %v1487 = vpop.f32.mrb[0].mxu0
    %1488 = vmatprep.mubr.bf16.mxu0 0
    %1489 = vmatmul.mubr.bf16.gmra.mrb[0].mxu0 %v1435
    %v1490 = vpop.f32.mrb[0].mxu0
    %v1491 = vadd.f32 0.0, %v1490
    %v1492 = vpop.f32.mrb[0].mxu0
    %v1493 = vpop.f32.mrb[0].mxu0
    %v1494 = vadd.f32 0.0, %v1493
    %v1495 = vpop.f32.mrb[0].mxu0
    %1496 = vmatprep.mubr.bf16.mxu0 0
    %1497 = vmatmul.mubr.bf16.gmra.mrb[0].mxu0 %v1438
    %v1498 = vpop.f32.mrb[0].mxu0
    %v1499 = vadd.f32 0.0, %v1498
    %v1500 = vpop.f32.mrb[0].mxu0
    %v1501 = vpop.f32.mrb[0].mxu0
    %v1502 = vadd.f32 0.0, %v1501
    %v1503 = vpop.f32.mrb[0].mxu0
    %1504 = vdwg.mxu0
    %v1513 = vunpack.c.l.b16 %v1388
    %v1514 = vunpack.c.l.b16 %v1389
    %v1515 = vunpack.c.l.b16 %v1390
    %v1516 = vunpack.c.l.b16 %v1391
    %v1517 = vunpack.c.l.b16 %v1392
    %v1518 = vunpack.c.l.b16 %v1393
    %v1519 = vunpack.c.l.b16 %v1394
    %v1520 = vunpack.c.l.b16 %v1395
    %v1521 = vpack.c.b16 %v1514, %v1513
    %v1522 = vpack.c.b16 %v1516, %v1515
    %v1523 = vpack.c.b16 %v1518, %v1517
    %v1524 = vpack.c.b16 %v1520, %v1519
    %v1530 = vsel %vm266, %v1356, 0
    %v1533 = vsel %vm266, %v1357, 0
    %v1536 = vsel %vm266, %v1358, 0
    %v1539 = vsel %vm266, %v1359, 0
    %1541 = vmatprep.subr.bf16.mxu0 0
    %1542 = vmatpush1.bf16.msra.mxu0 %v1521
    %1543 = vmatprep.subr.bf16.mxu0 0
    %1544 = vmatpush1.bf16.msra.mxu0 %v1522
    %1545 = vmatprep.subr.bf16.mxu0 0
    %1546 = vmatpush1.bf16.msra.mxu0 %v1523
    %1547 = vmatprep.subr.bf16.mxu0 0
    %1548 = vmatpush1.bf16.msra.mxu0 %v1524
    %1549 = vmatprep.subr.bf16.mxu0 0
    %1550 = vmatpush1.bf16.msra.mxu0 0
    %1551 = vmatprep.subr.bf16.mxu0 0
    %1552 = vmatpush1.bf16.msra.mxu0 0
    %1553 = vmatprep.subr.bf16.mxu0 0
    %1554 = vmatpush1.bf16.msra.mxu0 0
    %1555 = vmatprep.subr.bf16.mxu0 0
    %1556 = vmatpush1.bf16.msra.mxu0 0
    %1557 = vmatprep.subr.bf16.mxu0 0
    %1558 = vmatpush1.bf16.msra.mxu0 0
    %1559 = vmatprep.subr.bf16.mxu0 0
    %1560 = vmatpush1.bf16.msra.mxu0 0
    %1561 = vmatprep.subr.bf16.mxu0 0
    %1562 = vmatpush1.bf16.msra.mxu0 0
    %1563 = vmatprep.subr.bf16.mxu0 0
    %1564 = vmatpush1.bf16.msra.mxu0 0
    %1565 = vmatprep.subr.bf16.mxu0 0
    %1566 = vmatpush1.bf16.msra.mxu0 0
    %1567 = vmatprep.subr.bf16.mxu0 0
    %1568 = vmatpush1.bf16.msra.mxu0 0
    %1569 = vmatprep.subr.bf16.mxu0 0
    %1570 = vmatpush1.bf16.msra.mxu0 0
    %1571 = vmatprep.subr.bf16.mxu0 0
    %1572 = vmatpush1.bf16.msra.mxu0 0
    %1573 = vmatprep.mubr.bf16.mxu0 0
    %1574 = vmatmul.mubr.bf16.gmra.mrb[0].mxu0 %v1530
    %v1575 = vpop.f32.mrb[0].mxu0
    %v1576 = vadd.f32 %v1475, %v1575
    %v1577 = vpop.f32.mrb[0].mxu0
    %v1578 = vpop.f32.mrb[0].mxu0
    %v1579 = vadd.f32 %v1478, %v1578
    %v1580 = vpop.f32.mrb[0].mxu0
    %1581 = vmatprep.mubr.bf16.mxu0 0
    %1582 = vmatmul.mubr.bf16.gmra.mrb[0].mxu0 %v1533
    %v1583 = vpop.f32.mrb[0].mxu0
    %v1584 = vadd.f32 %v1483, %v1583
    %v1585 = vpop.f32.mrb[0].mxu0
    %v1586 = vpop.f32.mrb[0].mxu0
    %v1587 = vadd.f32 %v1486, %v1586
    %v1588 = vpop.f32.mrb[0].mxu0
    %1589 = vmatprep.mubr.bf16.mxu0 0
    %1590 = vmatmul.mubr.bf16.gmra.mrb[0].mxu0 %v1536
    %v1591 = vpop.f32.mrb[0].mxu0
    %v1592 = vadd.f32 %v1491, %v1591
    %v1593 = vpop.f32.mrb[0].mxu0
    %v1594 = vpop.f32.mrb[0].mxu0
    %v1595 = vadd.f32 %v1494, %v1594
    %v1596 = vpop.f32.mrb[0].mxu0
    %1597 = vmatprep.mubr.bf16.mxu0 0
    %1598 = vmatmul.mubr.bf16.gmra.mrb[0].mxu0 %v1539
    %v1599 = vpop.f32.mrb[0].mxu0
    %v1600 = vadd.f32 %v1499, %v1599
    %v1601 = vpop.f32.mrb[0].mxu0
    %v1602 = vpop.f32.mrb[0].mxu0
    %v1603 = vadd.f32 %v1502, %v1602
    %v1604 = vpop.f32.mrb[0].mxu0
    %1605 = vdwg.mxu0
    %v1606 = vld [vmem:[%s0 + $0x160] sm:$0xf]
    %v1607 = vld [vmem:[%s0 + $0x164] sm:$0xf]
    %v1608 = vld [vmem:[%s0 + $0x168] sm:$0xf]
    %v1609 = vld [vmem:[%s0 + $0x16c] sm:$0xf]
    %v1610 = vld [vmem:[%s0 + $0x170] sm:$0xf]
    %v1611 = vld [vmem:[%s0 + $0x174] sm:$0xf]
    %v1612 = vld [vmem:[%s0 + $0x178] sm:$0xf]
    %v1613 = vld [vmem:[%s0 + $0x17c] sm:$0xf]
    %v1622 = vunpack.c.l.b16 %v1606
    %v1623 = vunpack.c.l.b16 %v1607
    %v1624 = vunpack.c.l.b16 %v1608
    %v1625 = vunpack.c.l.b16 %v1609
    %v1626 = vunpack.c.l.b16 %v1610
    %v1627 = vunpack.c.l.b16 %v1611
    %v1628 = vunpack.c.l.b16 %v1612
    %v1629 = vunpack.c.l.b16 %v1613
    %v1630 = vpack.c.b16 %v1623, %v1622
    %v1631 = vpack.c.b16 %v1625, %v1624
    %v1632 = vpack.c.b16 %v1627, %v1626
    %v1633 = vpack.c.b16 %v1629, %v1628
    %v1639 = vsel %vm266, %v1364, 0
    %v1642 = vsel %vm266, %v1365, 0
    %v1645 = vsel %vm266, %v1366, 0
    %v1648 = vsel %vm266, %v1367, 0
    %1650 = vmatprep.subr.bf16.mxu0 0
    %1651 = vmatpush1.bf16.msra.mxu0 %v1630
    %1652 = vmatprep.subr.bf16.mxu0 0
    %1653 = vmatpush1.bf16.msra.mxu0 %v1631
    %1654 = vmatprep.subr.bf16.mxu0 0
    %1655 = vmatpush1.bf16.msra.mxu0 %v1632
    %1656 = vmatprep.subr.bf16.mxu0 0
    %1657 = vmatpush1.bf16.msra.mxu0 %v1633
    %1658 = vmatprep.subr.bf16.mxu0 0
    %1659 = vmatpush1.bf16.msra.mxu0 0
    %1660 = vmatprep.subr.bf16.mxu0 0
    %1661 = vmatpush1.bf16.msra.mxu0 0
    %1662 = vmatprep.subr.bf16.mxu0 0
    %1663 = vmatpush1.bf16.msra.mxu0 0
    %1664 = vmatprep.subr.bf16.mxu0 0
    %1665 = vmatpush1.bf16.msra.mxu0 0
    %1666 = vmatprep.subr.bf16.mxu0 0
    %1667 = vmatpush1.bf16.msra.mxu0 0
    %1668 = vmatprep.subr.bf16.mxu0 0
    %1669 = vmatpush1.bf16.msra.mxu0 0
    %1670 = vmatprep.subr.bf16.mxu0 0
    %1671 = vmatpush1.bf16.msra.mxu0 0
    %1672 = vmatprep.subr.bf16.mxu0 0
    %1673 = vmatpush1.bf16.msra.mxu0 0
    %1674 = vmatprep.subr.bf16.mxu0 0
    %1675 = vmatpush1.bf16.msra.mxu0 0
    %1676 = vmatprep.subr.bf16.mxu0 0
    %1677 = vmatpush1.bf16.msra.mxu0 0
    %1678 = vmatprep.subr.bf16.mxu0 0
    %1679 = vmatpush1.bf16.msra.mxu0 0
    %1680 = vmatprep.subr.bf16.mxu0 0
    %1681 = vmatpush1.bf16.msra.mxu0 0
    %1682 = vmatprep.mubr.bf16.mxu0 0
    %1683 = vmatmul.mubr.bf16.gmra.mrb[0].mxu0 %v1639
    %v1684 = vpop.f32.mrb[0].mxu0
    %v1685 = vadd.f32 0.0, %v1684
    %v1686 = vpop.f32.mrb[0].mxu0
    %v1687 = vpop.f32.mrb[0].mxu0
    %v1688 = vadd.f32 0.0, %v1687
    %v1689 = vpop.f32.mrb[0].mxu0
    %1690 = vmatprep.mubr.bf16.mxu0 0
    %1691 = vmatmul.mubr.bf16.gmra.mrb[0].mxu0 %v1642
    %v1692 = vpop.f32.mrb[0].mxu0
    %v1693 = vadd.f32 0.0, %v1692
    %v1694 = vpop.f32.mrb[0].mxu0
    %v1695 = vpop.f32.mrb[0].mxu0
    %v1696 = vadd.f32 0.0, %v1695
    %v1697 = vpop.f32.mrb[0].mxu0
    %1698 = vmatprep.mubr.bf16.mxu0 0
    %1699 = vmatmul.mubr.bf16.gmra.mrb[0].mxu0 %v1645
    %v1700 = vpop.f32.mrb[0].mxu0
    %v1701 = vadd.f32 0.0, %v1700
    %v1702 = vpop.f32.mrb[0].mxu0
    %v1703 = vpop.f32.mrb[0].mxu0
    %v1704 = vadd.f32 0.0, %v1703
    %v1705 = vpop.f32.mrb[0].mxu0
    %1706 = vmatprep.mubr.bf16.mxu0 0
    %1707 = vmatmul.mubr.bf16.gmra.mrb[0].mxu0 %v1648
    %v1708 = vpop.f32.mrb[0].mxu0
    %v1709 = vadd.f32 0.0, %v1708
    %v1710 = vpop.f32.mrb[0].mxu0
    %v1711 = vpop.f32.mrb[0].mxu0
    %v1712 = vadd.f32 0.0, %v1711
    %v1713 = vpop.f32.mrb[0].mxu0
    %1714 = vdwg.mxu0
    %v1715 = vadd.f32 %v1576, %v1685
    %v1716 = vadd.f32 %v1579, %v1688
    %v1717 = vadd.f32 %v1584, %v1693
    %v1718 = vadd.f32 %v1587, %v1696
    %v1719 = vadd.f32 %v1592, %v1701
    %v1720 = vadd.f32 %v1595, %v1704
    %v1721 = vadd.f32 %v1600, %v1709
    %v1722 = vadd.f32 %v1603, %v1712
    %v1723 = vld [vmem:[%s0 + $0x180] sm:$0xf]
    %v1724 = vld [vmem:[%s0 + $0x184] sm:$0xf]
    %v1725 = vld [vmem:[%s0 + $0x188] sm:$0xf]
    %v1726 = vld [vmem:[%s0 + $0x18c] sm:$0xf]
    %v1727 = vld [vmem:[%s0 + $0x190] sm:$0xf]
    %v1728 = vld [vmem:[%s0 + $0x194] sm:$0xf]
    %v1729 = vld [vmem:[%s0 + $0x198] sm:$0xf]
    %v1730 = vld [vmem:[%s0 + $0x19c] sm:$0xf]
    %v1739 = vunpack.c.l.b16 %v1723
    %v1740 = vunpack.c.l.b16 %v1724
    %v1741 = vunpack.c.l.b16 %v1725
    %v1742 = vunpack.c.l.b16 %v1726
    %v1743 = vunpack.c.l.b16 %v1727
    %v1744 = vunpack.c.l.b16 %v1728
    %v1745 = vunpack.c.l.b16 %v1729
    %v1746 = vunpack.c.l.b16 %v1730
    %v1747 = vpack.c.b16 %v1740, %v1739
    %v1748 = vpack.c.b16 %v1742, %v1741
    %v1749 = vpack.c.b16 %v1744, %v1743
    %v1750 = vpack.c.b16 %v1746, %v1745
    %v1756 = vsel %vm266, %v1368, 0
    %v1759 = vsel %vm266, %v1369, 0
    %v1762 = vsel %vm266, %v1370, 0
    %v1765 = vsel %vm266, %v1371, 0
    %1767 = vmatprep.subr.bf16.mxu0 0
    %1768 = vmatpush1.bf16.msra.mxu0 %v1747
    %1769 = vmatprep.subr.bf16.mxu0 0
    %1770 = vmatpush1.bf16.msra.mxu0 %v1748
    %1771 = vmatprep.subr.bf16.mxu0 0
    %1772 = vmatpush1.bf16.msra.mxu0 %v1749
    %1773 = vmatprep.subr.bf16.mxu0 0
    %1774 = vmatpush1.bf16.msra.mxu0 %v1750
    %1775 = vmatprep.subr.bf16.mxu0 0
    %1776 = vmatpush1.bf16.msra.mxu0 0
    %1777 = vmatprep.subr.bf16.mxu0 0
    %1778 = vmatpush1.bf16.msra.mxu0 0
    %1779 = vmatprep.subr.bf16.mxu0 0
    %1780 = vmatpush1.bf16.msra.mxu0 0
    %1781 = vmatprep.subr.bf16.mxu0 0
    %1782 = vmatpush1.bf16.msra.mxu0 0
    %1783 = vmatprep.subr.bf16.mxu0 0
    %1784 = vmatpush1.bf16.msra.mxu0 0
    %1785 = vmatprep.subr.bf16.mxu0 0
    %1786 = vmatpush1.bf16.msra.mxu0 0
    %1787 = vmatprep.subr.bf16.mxu0 0
    %1788 = vmatpush1.bf16.msra.mxu0 0
    %1789 = vmatprep.subr.bf16.mxu0 0
    %1790 = vmatpush1.bf16.msra.mxu0 0
    %1791 = vmatprep.subr.bf16.mxu0 0
    %1792 = vmatpush1.bf16.msra.mxu0 0
    %1793 = vmatprep.subr.bf16.mxu0 0
    %1794 = vmatpush1.bf16.msra.mxu0 0
    %1795 = vmatprep.subr.bf16.mxu0 0
    %1796 = vmatpush1.bf16.msra.mxu0 0
    %1797 = vmatprep.subr.bf16.mxu0 0
    %1798 = vmatpush1.bf16.msra.mxu0 0
    %1799 = vmatprep.mubr.bf16.mxu0 0
    %1800 = vmatmul.mubr.bf16.gmra.mrb[0].mxu0 %v1756
    %v1801 = vpop.f32.mrb[0].mxu0
    %v1802 = vadd.f32 0.0, %v1801
    %v1803 = vpop.f32.mrb[0].mxu0
    %v1804 = vpop.f32.mrb[0].mxu0
    %v1805 = vadd.f32 0.0, %v1804
    %v1806 = vpop.f32.mrb[0].mxu0
    %1807 = vmatprep.mubr.bf16.mxu0 0
    %1808 = vmatmul.mubr.bf16.gmra.mrb[0].mxu0 %v1759
    %v1809 = vpop.f32.mrb[0].mxu0
    %v1810 = vadd.f32 0.0, %v1809
    %v1811 = vpop.f32.mrb[0].mxu0
    %v1812 = vpop.f32.mrb[0].mxu0
    %v1813 = vadd.f32 0.0, %v1812
    %v1814 = vpop.f32.mrb[0].mxu0
    %1815 = vmatprep.mubr.bf16.mxu0 0
    %1816 = vmatmul.mubr.bf16.gmra.mrb[0].mxu0 %v1762
    %v1817 = vpop.f32.mrb[0].mxu0
    %v1818 = vadd.f32 0.0, %v1817
    %v1819 = vpop.f32.mrb[0].mxu0
    %v1820 = vpop.f32.mrb[0].mxu0
    %v1821 = vadd.f32 0.0, %v1820
    %v1822 = vpop.f32.mrb[0].mxu0
    %1823 = vmatprep.mubr.bf16.mxu0 0
    %1824 = vmatmul.mubr.bf16.gmra.mrb[0].mxu0 %v1765
    %v1825 = vpop.f32.mrb[0].mxu0
    %v1826 = vadd.f32 0.0, %v1825
    %v1827 = vpop.f32.mrb[0].mxu0
    %v1828 = vpop.f32.mrb[0].mxu0
    %v1829 = vadd.f32 0.0, %v1828
    %v1830 = vpop.f32.mrb[0].mxu0
    %1831 = vdwg.mxu0
    %v1832 = vadd.f32 %v1715, %v1802
    %v1833 = vadd.f32 %v1716, %v1805
    %v1834 = vadd.f32 %v1717, %v1810
    %v1835 = vadd.f32 %v1718, %v1813
    %v1836 = vadd.f32 %v1719, %v1818
    %v1837 = vadd.f32 %v1720, %v1821
    %v1838 = vadd.f32 %v1721, %v1826
    %v1839 = vadd.f32 %v1722, %v1829
    %v1840 = vld [vmem:[%s0 + $0x1a0] sm:$0xf]
    %v1841 = vld [vmem:[%s0 + $0x1a4] sm:$0xf]
    %v1842 = vld [vmem:[%s0 + $0x1a8] sm:$0xf]
    %v1843 = vld [vmem:[%s0 + $0x1ac] sm:$0xf]
    %v1844 = vld [vmem:[%s0 + $0x1b0] sm:$0xf]
    %v1845 = vld [vmem:[%s0 + $0x1b4] sm:$0xf]
    %v1846 = vld [vmem:[%s0 + $0x1b8] sm:$0xf]
    %v1847 = vld [vmem:[%s0 + $0x1bc] sm:$0xf]
    %v1856 = vunpack.c.l.b16 %v1840
    %v1857 = vunpack.c.l.b16 %v1841
    %v1858 = vunpack.c.l.b16 %v1842
    %v1859 = vunpack.c.l.b16 %v1843
    %v1860 = vunpack.c.l.b16 %v1844
    %v1861 = vunpack.c.l.b16 %v1845
    %v1862 = vunpack.c.l.b16 %v1846
    %v1863 = vunpack.c.l.b16 %v1847
    %v1864 = vpack.c.b16 %v1857, %v1856
    %v1865 = vpack.c.b16 %v1859, %v1858
    %v1866 = vpack.c.b16 %v1861, %v1860
    %v1867 = vpack.c.b16 %v1863, %v1862
    %v1873 = vsel %vm266, %v1372, 0
    %v1876 = vsel %vm266, %v1373, 0
    %v1879 = vsel %vm266, %v1374, 0
    %v1882 = vsel %vm266, %v1375, 0
    %1884 = vmatprep.subr.bf16.mxu0 0
    %1885 = vmatpush1.bf16.msra.mxu0 %v1864
    %1886 = vmatprep.subr.bf16.mxu0 0
    %1887 = vmatpush1.bf16.msra.mxu0 %v1865
    %1888 = vmatprep.subr.bf16.mxu0 0
    %1889 = vmatpush1.bf16.msra.mxu0 %v1866
    %1890 = vmatprep.subr.bf16.mxu0 0
    %1891 = vmatpush1.bf16.msra.mxu0 %v1867
    %1892 = vmatprep.subr.bf16.mxu0 0
    %1893 = vmatpush1.bf16.msra.mxu0 0
    %1894 = vmatprep.subr.bf16.mxu0 0
    %1895 = vmatpush1.bf16.msra.mxu0 0
    %1896 = vmatprep.subr.bf16.mxu0 0
    %1897 = vmatpush1.bf16.msra.mxu0 0
    %1898 = vmatprep.subr.bf16.mxu0 0
    %1899 = vmatpush1.bf16.msra.mxu0 0
    %1900 = vmatprep.subr.bf16.mxu0 0
    %1901 = vmatpush1.bf16.msra.mxu0 0
    %1902 = vmatprep.subr.bf16.mxu0 0
    %1903 = vmatpush1.bf16.msra.mxu0 0
    %1904 = vmatprep.subr.bf16.mxu0 0
    %1905 = vmatpush1.bf16.msra.mxu0 0
    %1906 = vmatprep.subr.bf16.mxu0 0
    %1907 = vmatpush1.bf16.msra.mxu0 0
    %1908 = vmatprep.subr.bf16.mxu0 0
    %1909 = vmatpush1.bf16.msra.mxu0 0
    %1910 = vmatprep.subr.bf16.mxu0 0
    %1911 = vmatpush1.bf16.msra.mxu0 0
    %1912 = vmatprep.subr.bf16.mxu0 0
    %1913 = vmatpush1.bf16.msra.mxu0 0
    %1914 = vmatprep.subr.bf16.mxu0 0
    %1915 = vmatpush1.bf16.msra.mxu0 0
    %1916 = vmatprep.mubr.bf16.mxu0 0
    %1917 = vmatmul.mubr.bf16.gmra.mrb[0].mxu0 %v1873
    %v1918 = vpop.f32.mrb[0].mxu0
    %v1919 = vadd.f32 0.0, %v1918
    %v1920 = vpop.f32.mrb[0].mxu0
    %v1921 = vpop.f32.mrb[0].mxu0
    %v1922 = vadd.f32 0.0, %v1921
    %v1923 = vpop.f32.mrb[0].mxu0
    %1924 = vmatprep.mubr.bf16.mxu0 0
    %1925 = vmatmul.mubr.bf16.gmra.mrb[0].mxu0 %v1876
    %v1926 = vpop.f32.mrb[0].mxu0
    %v1927 = vadd.f32 0.0, %v1926
    %v1928 = vpop.f32.mrb[0].mxu0
    %v1929 = vpop.f32.mrb[0].mxu0
    %v1930 = vadd.f32 0.0, %v1929
    %v1931 = vpop.f32.mrb[0].mxu0
    %1932 = vmatprep.mubr.bf16.mxu0 0
    %1933 = vmatmul.mubr.bf16.gmra.mrb[0].mxu0 %v1879
    %v1934 = vpop.f32.mrb[0].mxu0
    %v1935 = vadd.f32 0.0, %v1934
    %v1936 = vpop.f32.mrb[0].mxu0
    %v1937 = vpop.f32.mrb[0].mxu0
    %v1938 = vadd.f32 0.0, %v1937
    %v1939 = vpop.f32.mrb[0].mxu0
    %1940 = vmatprep.mubr.bf16.mxu0 0
    %1941 = vmatmul.mubr.bf16.gmra.mrb[0].mxu0 %v1882
    %v1942 = vpop.f32.mrb[0].mxu0
    %v1943 = vadd.f32 0.0, %v1942
    %v1944 = vpop.f32.mrb[0].mxu0
    %v1945 = vpop.f32.mrb[0].mxu0
    %v1946 = vadd.f32 0.0, %v1945
    %v1947 = vpop.f32.mrb[0].mxu0
    %1948 = vdwg.mxu0
    %v1949 = vadd.f32 %v1832, %v1919
    %v1950 = vadd.f32 %v1833, %v1922
    %v1951 = vadd.f32 %v1834, %v1927
    %v1952 = vadd.f32 %v1835, %v1930
    %v1953 = vadd.f32 %v1836, %v1935
    %v1954 = vadd.f32 %v1837, %v1938
    %v1955 = vadd.f32 %v1838, %v1943
    %v1956 = vadd.f32 %v1839, %v1946
    %v1957 = vld [vmem:[%s0 + $0x1c0] sm:$0xf]
    %v1958 = vld [vmem:[%s0 + $0x1c4] sm:$0xf]
    %v1959 = vld [vmem:[%s0 + $0x1c8] sm:$0xf]
    %v1960 = vld [vmem:[%s0 + $0x1cc] sm:$0xf]
    %v1961 = vld [vmem:[%s0 + $0x1d0] sm:$0xf]
    %v1962 = vld [vmem:[%s0 + $0x1d4] sm:$0xf]
    %v1963 = vld [vmem:[%s0 + $0x1d8] sm:$0xf]
    %v1964 = vld [vmem:[%s0 + $0x1dc] sm:$0xf]
    %v1973 = vunpack.c.l.b16 %v1957
    %v1974 = vunpack.c.l.b16 %v1958
    %v1975 = vunpack.c.l.b16 %v1959
    %v1976 = vunpack.c.l.b16 %v1960
    %v1977 = vunpack.c.l.b16 %v1961
    %v1978 = vunpack.c.l.b16 %v1962
    %v1979 = vunpack.c.l.b16 %v1963
    %v1980 = vunpack.c.l.b16 %v1964
    %v1981 = vpack.c.b16 %v1974, %v1973
    %v1982 = vpack.c.b16 %v1976, %v1975
    %v1983 = vpack.c.b16 %v1978, %v1977
    %v1984 = vpack.c.b16 %v1980, %v1979
    %v1990 = vsel %vm266, %v1376, 0
    %v1993 = vsel %vm266, %v1377, 0
    %v1996 = vsel %vm266, %v1378, 0
    %v1999 = vsel %vm266, %v1379, 0
    %2001 = vmatprep.subr.bf16.mxu0 0
    %2002 = vmatpush1.bf16.msra.mxu0 %v1981
    %2003 = vmatprep.subr.bf16.mxu0 0
    %2004 = vmatpush1.bf16.msra.mxu0 %v1982
    %2005 = vmatprep.subr.bf16.mxu0 0
    %2006 = vmatpush1.bf16.msra.mxu0 %v1983
    %2007 = vmatprep.subr.bf16.mxu0 0
    %2008 = vmatpush1.bf16.msra.mxu0 %v1984
    %2009 = vmatprep.subr.bf16.mxu0 0
    %2010 = vmatpush1.bf16.msra.mxu0 0
    %2011 = vmatprep.subr.bf16.mxu0 0
    %2012 = vmatpush1.bf16.msra.mxu0 0
    %2013 = vmatprep.subr.bf16.mxu0 0
    %2014 = vmatpush1.bf16.msra.mxu0 0
    %2015 = vmatprep.subr.bf16.mxu0 0
    %2016 = vmatpush1.bf16.msra.mxu0 0
    %2017 = vmatprep.subr.bf16.mxu0 0
    %2018 = vmatpush1.bf16.msra.mxu0 0
    %2019 = vmatprep.subr.bf16.mxu0 0
    %2020 = vmatpush1.bf16.msra.mxu0 0
    %2021 = vmatprep.subr.bf16.mxu0 0
    %2022 = vmatpush1.bf16.msra.mxu0 0
    %2023 = vmatprep.subr.bf16.mxu0 0
    %2024 = vmatpush1.bf16.msra.mxu0 0
    %2025 = vmatprep.subr.bf16.mxu0 0
    %2026 = vmatpush1.bf16.msra.mxu0 0
    %2027 = vmatprep.subr.bf16.mxu0 0
    %2028 = vmatpush1.bf16.msra.mxu0 0
    %2029 = vmatprep.subr.bf16.mxu0 0
    %2030 = vmatpush1.bf16.msra.mxu0 0
    %2031 = vmatprep.subr.bf16.mxu0 0
    %2032 = vmatpush1.bf16.msra.mxu0 0
    %2033 = vmatprep.mubr.bf16.mxu0 0
    %2034 = vmatmul.mubr.bf16.gmra.mrb[0].mxu0 %v1990
    %v2035 = vpop.f32.mrb[0].mxu0
    %v2036 = vadd.f32 0.0, %v2035
    %v2037 = vpop.f32.mrb[0].mxu0
    %v2038 = vpop.f32.mrb[0].mxu0
    %v2039 = vadd.f32 0.0, %v2038
    %v2040 = vpop.f32.mrb[0].mxu0
    %2041 = vmatprep.mubr.bf16.mxu0 0
    %2042 = vmatmul.mubr.bf16.gmra.mrb[0].mxu0 %v1993
    %v2043 = vpop.f32.mrb[0].mxu0
    %v2044 = vadd.f32 0.0, %v2043
    %v2045 = vpop.f32.mrb[0].mxu0
    %v2046 = vpop.f32.mrb[0].mxu0
    %v2047 = vadd.f32 0.0, %v2046
    %v2048 = vpop.f32.mrb[0].mxu0
    %2049 = vmatprep.mubr.bf16.mxu0 0
    %2050 = vmatmul.mubr.bf16.gmra.mrb[0].mxu0 %v1996
    %v2051 = vpop.f32.mrb[0].mxu0
    %v2052 = vadd.f32 0.0, %v2051
    %v2053 = vpop.f32.mrb[0].mxu0
    %v2054 = vpop.f32.mrb[0].mxu0
    %v2055 = vadd.f32 0.0, %v2054
    %v2056 = vpop.f32.mrb[0].mxu0
    %2057 = vmatprep.mubr.bf16.mxu0 0
    %2058 = vmatmul.mubr.bf16.gmra.mrb[0].mxu0 %v1999
    %v2059 = vpop.f32.mrb[0].mxu0
    %v2060 = vadd.f32 0.0, %v2059
    %v2061 = vpop.f32.mrb[0].mxu0
    %v2062 = vpop.f32.mrb[0].mxu0
    %v2063 = vadd.f32 0.0, %v2062
    %v2064 = vpop.f32.mrb[0].mxu0
    %2065 = vdwg.mxu0
    %v2066 = vadd.f32 %v1949, %v2036
    %v2067 = vadd.f32 %v1950, %v2039
    %v2068 = vadd.f32 %v1951, %v2044
    %v2069 = vadd.f32 %v1952, %v2047
    %v2070 = vadd.f32 %v1953, %v2052
    %v2071 = vadd.f32 %v1954, %v2055
    %v2072 = vadd.f32 %v1955, %v2060
    %v2073 = vadd.f32 %v1956, %v2063
    %v2074 = vld [vmem:[%s0 + $0x1e0] sm:$0xf]
    %v2075 = vld [vmem:[%s0 + $0x1e4] sm:$0xf]
    %v2076 = vld [vmem:[%s0 + $0x1e8] sm:$0xf]
    %v2077 = vld [vmem:[%s0 + $0x1ec] sm:$0xf]
    %v2078 = vld [vmem:[%s0 + $0x1f0] sm:$0xf]
    %v2079 = vld [vmem:[%s0 + $0x1f4] sm:$0xf]
    %v2080 = vld [vmem:[%s0 + $0x1f8] sm:$0xf]
    %v2081 = vld [vmem:[%s0 + $0x1fc] sm:$0xf]
    %v2090 = vunpack.c.l.b16 %v2074
    %v2091 = vunpack.c.l.b16 %v2075
    %v2092 = vunpack.c.l.b16 %v2076
    %v2093 = vunpack.c.l.b16 %v2077
    %v2094 = vunpack.c.l.b16 %v2078
    %v2095 = vunpack.c.l.b16 %v2079
    %v2096 = vunpack.c.l.b16 %v2080
    %v2097 = vunpack.c.l.b16 %v2081
    %v2098 = vpack.c.b16 %v2091, %v2090
    %v2099 = vpack.c.b16 %v2093, %v2092
    %v2100 = vpack.c.b16 %v2095, %v2094
    %v2101 = vpack.c.b16 %v2097, %v2096
    %v2107 = vsel %vm266, %v1380, 0
    %v2110 = vsel %vm266, %v1381, 0
    %v2113 = vsel %vm266, %v1382, 0
    %v2116 = vsel %vm266, %v1383, 0
    %2118 = vmatprep.subr.bf16.mxu0 0
    %2119 = vmatpush1.bf16.msra.mxu0 %v2098
    %2120 = vmatprep.subr.bf16.mxu0 0
    %2121 = vmatpush1.bf16.msra.mxu0 %v2099
    %2122 = vmatprep.subr.bf16.mxu0 0
    %2123 = vmatpush1.bf16.msra.mxu0 %v2100
    %2124 = vmatprep.subr.bf16.mxu0 0
    %2125 = vmatpush1.bf16.msra.mxu0 %v2101
    %2126 = vmatprep.subr.bf16.mxu0 0
    %2127 = vmatpush1.bf16.msra.mxu0 0
    %2128 = vmatprep.subr.bf16.mxu0 0
    %2129 = vmatpush1.bf16.msra.mxu0 0
    %2130 = vmatprep.subr.bf16.mxu0 0
    %2131 = vmatpush1.bf16.msra.mxu0 0
    %2132 = vmatprep.subr.bf16.mxu0 0
    %2133 = vmatpush1.bf16.msra.mxu0 0
    %2134 = vmatprep.subr.bf16.mxu0 0
    %2135 = vmatpush1.bf16.msra.mxu0 0
    %2136 = vmatprep.subr.bf16.mxu0 0
    %2137 = vmatpush1.bf16.msra.mxu0 0
    %2138 = vmatprep.subr.bf16.mxu0 0
    %2139 = vmatpush1.bf16.msra.mxu0 0
    %2140 = vmatprep.subr.bf16.mxu0 0
    %2141 = vmatpush1.bf16.msra.mxu0 0
    %2142 = vmatprep.subr.bf16.mxu0 0
    %2143 = vmatpush1.bf16.msra.mxu0 0
    %2144 = vmatprep.subr.bf16.mxu0 0
    %2145 = vmatpush1.bf16.msra.mxu0 0
    %2146 = vmatprep.subr.bf16.mxu0 0
    %2147 = vmatpush1.bf16.msra.mxu0 0
    %2148 = vmatprep.subr.bf16.mxu0 0
    %2149 = vmatpush1.bf16.msra.mxu0 0
    %2150 = vmatprep.mubr.bf16.mxu0 0
    %2151 = vmatmul.mubr.bf16.gmra.mrb[0].mxu0 %v2107
    %v2152 = vpop.f32.mrb[0].mxu0
    %v2153 = vadd.f32 0.0, %v2152
    %v2154 = vpop.f32.mrb[0].mxu0
    %v2155 = vpop.f32.mrb[0].mxu0
    %v2156 = vadd.f32 0.0, %v2155
    %v2157 = vpop.f32.mrb[0].mxu0
    %2158 = vmatprep.mubr.bf16.mxu0 0
    %2159 = vmatmul.mubr.bf16.gmra.mrb[0].mxu0 %v2110
    %v2160 = vpop.f32.mrb[0].mxu0
    %v2161 = vadd.f32 0.0, %v2160
    %v2162 = vpop.f32.mrb[0].mxu0
    %v2163 = vpop.f32.mrb[0].mxu0
    %v2164 = vadd.f32 0.0, %v2163
    %v2165 = vpop.f32.mrb[0].mxu0
    %2166 = vmatprep.mubr.bf16.mxu0 0
    %2167 = vmatmul.mubr.bf16.gmra.mrb[0].mxu0 %v2113
    %v2168 = vpop.f32.mrb[0].mxu0
    %v2169 = vadd.f32 0.0, %v2168
    %v2170 = vpop.f32.mrb[0].mxu0
    %v2171 = vpop.f32.mrb[0].mxu0
    %v2172 = vadd.f32 0.0, %v2171
    %v2173 = vpop.f32.mrb[0].mxu0
    %2174 = vmatprep.mubr.bf16.mxu0 0
    %2175 = vmatmul.mubr.bf16.gmra.mrb[0].mxu0 %v2116
    %v2176 = vpop.f32.mrb[0].mxu0
    %v2177 = vadd.f32 0.0, %v2176
    %v2178 = vpop.f32.mrb[0].mxu0
    %v2179 = vpop.f32.mrb[0].mxu0
    %v2180 = vadd.f32 0.0, %v2179
    %v2181 = vpop.f32.mrb[0].mxu0
    %2182 = vdwg.mxu0
    %v2183 = vadd.f32 %v2066, %v2153
    %v2184 = vadd.f32 %v2067, %v2156
    %v2185 = vadd.f32 %v2068, %v2161
    %v2186 = vadd.f32 %v2069, %v2164
    %v2187 = vadd.f32 %v2070, %v2169
    %v2188 = vadd.f32 %v2071, %v2172
    %v2189 = vadd.f32 %v2072, %v2177
    %v2190 = vadd.f32 %v2073, %v2180
    %v2191 = vld [vmem:[%s0 + $0x200] sm:$0xf]
    %v2192 = vld [vmem:[%s0 + $0x204] sm:$0xf]
    %v2193 = vld [vmem:[%s0 + $0x208] sm:$0xf]
    %v2194 = vld [vmem:[%s0 + $0x20c] sm:$0xf]
    %v2195 = vld [vmem:[%s0 + $0x210] sm:$0xf]
    %v2196 = vld [vmem:[%s0 + $0x214] sm:$0xf]
    %v2197 = vld [vmem:[%s0 + $0x218] sm:$0xf]
    %v2198 = vld [vmem:[%s0 + $0x21c] sm:$0xf]
    %v2207 = vunpack.c.l.b16 %v2191
    %v2208 = vunpack.c.l.b16 %v2192
    %v2209 = vunpack.c.l.b16 %v2193
    %v2210 = vunpack.c.l.b16 %v2194
    %v2211 = vunpack.c.l.b16 %v2195
    %v2212 = vunpack.c.l.b16 %v2196
    %v2213 = vunpack.c.l.b16 %v2197
    %v2214 = vunpack.c.l.b16 %v2198
    %v2215 = vpack.c.b16 %v2208, %v2207
    %v2216 = vpack.c.b16 %v2210, %v2209
    %v2217 = vpack.c.b16 %v2212, %v2211
    %v2218 = vpack.c.b16 %v2214, %v2213
    %v2224 = vsel %vm266, %v1384, 0
    %v2227 = vsel %vm266, %v1385, 0
    %v2230 = vsel %vm266, %v1386, 0
    %v2233 = vsel %vm266, %v1387, 0
    %2235 = vmatprep.subr.bf16.mxu0 0
    %2236 = vmatpush1.bf16.msra.mxu0 %v2215
    %2237 = vmatprep.subr.bf16.mxu0 0
    %2238 = vmatpush1.bf16.msra.mxu0 %v2216
    %2239 = vmatprep.subr.bf16.mxu0 0
    %2240 = vmatpush1.bf16.msra.mxu0 %v2217
    %2241 = vmatprep.subr.bf16.mxu0 0
    %2242 = vmatpush1.bf16.msra.mxu0 %v2218
    %2243 = vmatprep.subr.bf16.mxu0 0
    %2244 = vmatpush1.bf16.msra.mxu0 0
    %2245 = vmatprep.subr.bf16.mxu0 0
    %2246 = vmatpush1.bf16.msra.mxu0 0
    %2247 = vmatprep.subr.bf16.mxu0 0
    %2248 = vmatpush1.bf16.msra.mxu0 0
    %2249 = vmatprep.subr.bf16.mxu0 0
    %2250 = vmatpush1.bf16.msra.mxu0 0
    %2251 = vmatprep.subr.bf16.mxu0 0
    %2252 = vmatpush1.bf16.msra.mxu0 0
    %2253 = vmatprep.subr.bf16.mxu0 0
    %2254 = vmatpush1.bf16.msra.mxu0 0
    %2255 = vmatprep.subr.bf16.mxu0 0
    %2256 = vmatpush1.bf16.msra.mxu0 0
    %2257 = vmatprep.subr.bf16.mxu0 0
    %2258 = vmatpush1.bf16.msra.mxu0 0
    %2259 = vmatprep.subr.bf16.mxu0 0
    %2260 = vmatpush1.bf16.msra.mxu0 0
    %2261 = vmatprep.subr.bf16.mxu0 0
    %2262 = vmatpush1.bf16.msra.mxu0 0
    %2263 = vmatprep.subr.bf16.mxu0 0
    %2264 = vmatpush1.bf16.msra.mxu0 0
    %2265 = vmatprep.subr.bf16.mxu0 0
    %2266 = vmatpush1.bf16.msra.mxu0 0
    %2267 = vmatprep.mubr.bf16.mxu0 0
    %2268 = vmatmul.mubr.bf16.gmra.mrb[0].mxu0 %v2224
    %v2269 = vpop.f32.mrb[0].mxu0
    %v2270 = vadd.f32 0.0, %v2269
    %v2271 = vpop.f32.mrb[0].mxu0
    %v2272 = vpop.f32.mrb[0].mxu0
    %v2273 = vadd.f32 0.0, %v2272
    %v2274 = vpop.f32.mrb[0].mxu0
    %2275 = vmatprep.mubr.bf16.mxu0 0
    %2276 = vmatmul.mubr.bf16.gmra.mrb[0].mxu0 %v2227
    %v2277 = vpop.f32.mrb[0].mxu0
    %v2278 = vadd.f32 0.0, %v2277
    %v2279 = vpop.f32.mrb[0].mxu0
    %v2280 = vpop.f32.mrb[0].mxu0
    %v2281 = vadd.f32 0.0, %v2280
    %v2282 = vpop.f32.mrb[0].mxu0
    %2283 = vmatprep.mubr.bf16.mxu0 0
    %2284 = vmatmul.mubr.bf16.gmra.mrb[0].mxu0 %v2230
    %v2285 = vpop.f32.mrb[0].mxu0
    %v2286 = vadd.f32 0.0, %v2285
    %v2287 = vpop.f32.mrb[0].mxu0
    %v2288 = vpop.f32.mrb[0].mxu0
    %v2289 = vadd.f32 0.0, %v2288
    %v2290 = vpop.f32.mrb[0].mxu0
    %2291 = vmatprep.mubr.bf16.mxu0 0
    %2292 = vmatmul.mubr.bf16.gmra.mrb[0].mxu0 %v2233
    %v2293 = vpop.f32.mrb[0].mxu0
    %v2294 = vadd.f32 0.0, %v2293
    %v2295 = vpop.f32.mrb[0].mxu0
    %v2296 = vpop.f32.mrb[0].mxu0
    %v2297 = vadd.f32 0.0, %v2296
    %v2298 = vpop.f32.mrb[0].mxu0
    %2299 = vdwg.mxu0
    %v2300 = vadd.f32 %v2183, %v2270
    %v2301 = vadd.f32 %v2184, %v2273
    %v2302 = vadd.f32 %v2185, %v2278
    %v2303 = vadd.f32 %v2186, %v2281
    %v2304 = vadd.f32 %v2187, %v2286
    %v2305 = vadd.f32 %v2188, %v2289
    %v2306 = vadd.f32 %v2189, %v2294
    %v2307 = vadd.f32 %v2190, %v2297
    %2308 = vst.msk [vmem:[#allocation2] sm:$0xff] %vm266, %v2300
    %2309 = vst.msk [vmem:[#allocation2 + $0x8] sm:$0xff] %vm266, %v2301
    %2310 = vst.msk [vmem:[#allocation2 + $0x10] sm:$0xff] %vm266, %v2302
    %2311 = vst.msk [vmem:[#allocation2 + $0x18] sm:$0xff] %vm266, %v2303
    %2312 = vst.msk [vmem:[#allocation2 + $0x20] sm:$0xff] %vm266, %v2304
    %2313 = vst.msk [vmem:[#allocation2 + $0x28] sm:$0xff] %vm266, %v2305
    %2314 = vst.msk [vmem:[#allocation2 + $0x30] sm:$0xff] %vm266, %v2306
    %2315 = vst.msk [vmem:[#allocation2 + $0x38] sm:$0xff] %vm266, %v2307
    // Predicated region
    $region6: #{mha_from_slab.1} parent=1 // pred_check
      _
    $region7: #{mha_from_slab.1} parent=1 // pred_check_branch
      %2317 = sbr.rel (0) target = $region9
    $region8: #{mha_from_slab.1} parent=1 // pred_region
      %s2319 = ssub.s32 1024, 1024
      %2320 = vsyncadd [#allocation3], %s2319
      %s2321 = sshll.u32 [#allocation2], 4
      %s2322 = int_to_ptr.vmem [resolvable:$true] %s2321
      %2327 = dma.vmem_to_hbm [thread:$0]  %s2322, 1024, %s1, [#allocation3], 128, 128, 8
    $region9: #{mha_from_slab.1} parent=1 // pred_fallthru
      _
    // Predicated region
    $region10: #{mha_from_slab.1} parent=1 // pred_check
      _
    $region11: #{mha_from_slab.1} parent=1 // pred_check_branch
      %2329 = sbr.rel (0) target = $region13
    $region12: #{mha_from_slab.1} parent=1 // pred_region
      %2330 = dma.done [#allocation3], 1024
    $region13: #{mha_from_slab.1} parent=1 // pred_fallthru
      _
    %2331 = vsyncpa [#allocation3], 1

</llo_original>
